<compile_context>
chip_gen: v6e
topology: v6e:2x2x1
jax: 0.10.0
libtpu: 0.0.40
codegen_flags: <defaults>
</compile_context>

<pallas_src>
import jax
import jax.numpy as jnp
from jax.experimental import pallas as pl
from jax.experimental.pallas import tpu as pltpu


def _round_up(x, m):
    return (x + m - 1) // m * m


def _lstm_classifier_kernel(idx_ref, x_ref, w_ih_ref, w_hh_ref, b_ref,
                            wout_ref, bout_ref, out_ref,
                            gx_ref, hx_ref, cx_ref, fin_ref):
    c = pl.program_id(1)                    # time-chunk index (sequential axis)
    n_chunks = pl.num_programs(1)
    b_tile, hw = hx_ref.shape               # hw == gate stride in the Gp axis
    t_chunk = x_ref.shape[0] // b_tile

    @pl.when(c == 0)
    def _init():
        hx_ref[...] = jnp.zeros_like(hx_ref)
        cx_ref[...] = jnp.zeros_like(cx_ref)
        fin_ref[...] = jnp.zeros_like(fin_ref)

    # ---- hoisted input projection: one big-M MXU dot per chunk, bias folded ----
    gx_ref[...] = (jnp.dot(x_ref[...], w_ih_ref[...],
                           preferred_element_type=jnp.float32)
                   + b_ref[...])            # (t_chunk*b_tile, Gp) f32

    # ---- recurrence: state carried in vregs, written back once per chunk ----
    idx = idx_ref[...]                      # (b_tile, 1) int32 final-step index
    w_hh = w_hh_ref[...]                    # (hw, Gp) bf16, hoisted out of loop
    t0 = c * t_chunk
    hx = hx_ref[...]
    cx = cx_ref[...]
    fin = fin_ref[...]
    for s in range(t_chunk):                # fully unrolled; static slices
        gates = (gx_ref[pl.ds(s * b_tile, b_tile), :]
                 + jnp.dot(hx.astype(w_hh.dtype), w_hh,
                           preferred_element_type=jnp.float32))
        i_g = jax.nn.sigmoid(gates[:, 0 * hw:1 * hw])
        f_g = jax.nn.sigmoid(gates[:, 1 * hw:2 * hw])
        g_g = jnp.tanh(gates[:, 2 * hw:3 * hw])
        o_g = jax.nn.sigmoid(gates[:, 3 * hw:4 * hw])
        cx = f_g * cx + i_g * g_g
        hx = o_g * jnp.tanh(cx)
        # Capture each row's hidden state at its final valid timestep (vreg select).
        fin = jnp.where(idx == t0 + s, hx, fin)
    hx_ref[...] = hx
    cx_ref[...] = cx
    fin_ref[...] = fin

    @pl.when(c == n_chunks - 1)
    def _finalize():
        out_ref[...] = (jnp.dot(fin.astype(wout_ref.dtype), wout_ref[...],
                                preferred_element_type=jnp.float32)
                        + bout_ref[...])


def lstm_classifier_forward(tokens, emb, w_ih, w_hh, b_ih, b_hh, w_out, b_out,
                            *, t_chunk=16, b_tile=None):
    """tokens: int32 [B, T].  Weights use (in, out) layout: w_ih (E, 4H),
    w_hh (H, 4H), w_out (H, O).  Returns logits [B, output_dim] (float32)."""
    B, T = tokens.shape
    E = emb.shape[1]
    H = w_hh.shape[0]
    O = w_out.shape[1]

    # ---- gate layout (conditional, lane-aligned) ----
    if 4 * H <= 128:
        Hw = H                              # all 4 gates share one 128-lane block
        Gp = 128
    else:
        Hw = _round_up(H, 128)              # each gate owns a 128-aligned block
        Gp = 4 * Hw
    Op = _round_up(O, 128)
    Bp = _round_up(B, 16)                   # sublane pack for bf16 activations

    t_chunk = max(1, min(t_chunk, T))
    Tp = _round_up(T, t_chunk)
    n_chunks = Tp // t_chunk

    if b_tile is None:
        if Bp % 512 == 0:
            b_tile = 256                    # one full v6e/v7x MXU pass per tile
        elif Bp >= 32 and Bp % 32 == 0:
            b_tile = Bp // 2                # >=2 tiles so v7x can shard the batch
        else:
            b_tile = Bp
    assert Bp % b_tile == 0 and b_tile % 16 == 0
    n_btiles = Bp // b_tile

    # ---- glue: per-row final-timestep index ----
    if B == 1:
        idx = jnp.full((B,), T - 1, jnp.int32)       # PyTorch path: final = hx
    else:
        mask = tokens != 1
        lengths = mask.sum(axis=1).astype(jnp.int32)
        idx = lengths - 1
        # masked_fill_ semantics: if the selected position is a pad, final = 0.
        sel_ok = jnp.take_along_axis(mask, jnp.clip(idx, 0, T - 1)[:, None],
                                     axis=1)[:, 0]
        idx = jnp.where(sel_ok, idx, -1)             # -1 => never selected
    idx_p = jnp.full((Bp, 1), -1, jnp.int32).at[:B, 0].set(idx)

    # ---- glue: bf16 embeddings gathered at unpadded width E and pre-flattened
    #      to the kernel's per-(chunk, batch-tile) block layout ----
    tokens_p = jnp.full((Bp, Tp), 1, jnp.int32).at[:B, :T].set(tokens)
    tok = tokens_p.T.reshape(n_chunks, t_chunk, n_btiles, b_tile)
    tok = tok.transpose(0, 2, 1, 3).reshape(n_chunks, n_btiles, t_chunk * b_tile)
    x_flat = emb.astype(jnp.bfloat16)[tok]          # (n_chunks, n_btiles, tc*bt, E)

    # ---- gate-aligned weights (zero-padded lanes stay exactly 0) ----
    w_ih_p = jnp.zeros((E, Gp), jnp.float32)
    w_hh_p = jnp.zeros((Hw, Gp), jnp.float32)
    bias_p = jnp.zeros((1, Gp), jnp.float32)
    for k in range(4):
        w_ih_p = w_ih_p.at[:, k * Hw:k * Hw + H].set(w_ih[:, k * H:(k + 1) * H])
        w_hh_p = w_hh_p.at[:H, k * Hw:k * Hw + H].set(w_hh[:, k * H:(k + 1) * H])
        bias_p = bias_p.at[0, k * Hw:k * Hw + H].set(
            b_ih[k * H:(k + 1) * H] + b_hh[k * H:(k + 1) * H])
    w_ih_p = w_ih_p.astype(jnp.bfloat16)
    w_hh_p = w_hh_p.astype(jnp.bfloat16)
    w_out_p = jnp.zeros((Hw, Op), jnp.float32).at[:H, :O].set(w_out)
    w_out_p = w_out_p.astype(jnp.bfloat16)
    b_out_p = jnp.zeros((1, Op), jnp.float32).at[0, :O].set(b_out)

    # ---- scoped-VMEM budget: double-buffered BlockSpec inputs/outputs + scratch ----
    buffered = (b_tile * 4                              # idx
                + t_chunk * b_tile * E * 2              # x chunk (bf16)
                + E * Gp * 2 + Hw * Gp * 2 + Gp * 4     # W_ih, W_hh, bias
                + Hw * Op * 2 + Op * 4                  # W_out, b_out
                + b_tile * Op * 4)                      # logits block
    scratch = t_chunk * b_tile * Gp * 4 + 3 * b_tile * Hw * 4
    vmem_limit = min(2 * buffered + scratch + (4 << 20), 128 << 20)

    grid_spec = pltpu.PrefetchScalarGridSpec(
        num_scalar_prefetch=0,
        grid=(n_btiles, n_chunks),
        in_specs=[
            pl.BlockSpec((b_tile, 1), lambda b, c: (b, 0)),               # idx
            pl.BlockSpec((None, None, t_chunk * b_tile, E),
                         lambda b, c: (c, b, 0, 0)),                      # x chunk
            pl.BlockSpec((E, Gp), lambda b, c: (0, 0)),                   # W_ih
            pl.BlockSpec((Hw, Gp), lambda b, c: (0, 0)),                  # W_hh
            pl.BlockSpec((1, Gp), lambda b, c: (0, 0)),                   # bias
            pl.BlockSpec((Hw, Op), lambda b, c: (0, 0)),                  # W_out
            pl.BlockSpec((1, Op), lambda b, c: (0, 0)),                   # b_out
        ],
        out_specs=pl.BlockSpec((b_tile, Op), lambda b, c: (b, 0)),        # logits
        scratch_shapes=[
            pltpu.VMEM((t_chunk * b_tile, Gp), jnp.float32),  # hoisted gates_x
            pltpu.VMEM((b_tile, Hw), jnp.float32),            # hx
            pltpu.VMEM((b_tile, Hw), jnp.float32),            # cx
            pltpu.VMEM((b_tile, Hw), jnp.float32),            # selected final hidden
        ],
    )

    logits_p = pl.pallas_call(
        _lstm_classifier_kernel,
        out_shape=jax.ShapeDtypeStruct((Bp, Op), jnp.float32),
        grid_spec=grid_spec,
        compiler_params=pltpu.CompilerParams(
            dimension_semantics=("parallel", "arbitrary"),  # batch || ; time seq
            vmem_limit_bytes=int(vmem_limit)),
    )(idx_p, x_flat, w_ih_p, w_hh_p, bias_p, w_out_p, b_out_p)

    return logits_p[:B, :O]


def _reference_forward(tokens, emb, w_ih, w_hh, b_ih, b_hh, w_out, b_out):
    """Pure-JAX f32 reference mirroring the PyTorch forward (eval mode)."""
    B, T = tokens.shape
    H = w_hh.shape[0]
    inp = emb[tokens]
    hx = jnp.zeros((B, H), jnp.float32)
    cx = jnp.zeros((B, H), jnp.float32)
    hs = []
    for t in range(T):
        gates = inp[:, t] @ w_ih + hx @ w_hh + b_ih + b_hh
        i_g = jax.nn.sigmoid(gates[:, 0 * H:1 * H])
        f_g = jax.nn.sigmoid(gates[:, 1 * H:2 * H])
        g_g = jnp.tanh(gates[:, 2 * H:3 * H])
        o_g = jax.nn.sigmoid(gates[:, 3 * H:4 * H])
        cx = f_g * cx + i_g * g_g
        hx = o_g * jnp.tanh(cx)
        hs.append(hx)
    if B == 1:
        final = hx
    else:
        outs = jnp.stack(hs, axis=1)                         # (B, T, H)
        pad = (tokens == 1)[:, :, None]
        outs = jnp.where(pad, 0.0, outs)
        lengths = (tokens != 1).sum(axis=1)
        flat_idx = lengths - 1 + jnp.arange(B) * T
        final = outs.reshape(-1, H)[flat_idx]
    return final @ w_out + b_out


if __name__ == "__main__":
    # Small deterministic configuration.
    vocab_size, E, H, O = 20, 16, 32, 4
    B, T = 2, 12

    key = jax.random.PRNGKey(0)
    ks = jax.random.split(key, 8)

    emb = 0.1 * jax.random.normal(ks[0], (vocab_size, E), jnp.float32)
    emb = emb.at[1].set(0.0)                     # padding_idx=1
    w_ih = 0.1 * jax.random.normal(ks[1], (E, 4 * H), jnp.float32)
    w_hh = 0.1 * jax.random.normal(ks[2], (H, 4 * H), jnp.float32)
    b_ih = 0.1 * jax.random.normal(ks[3], (4 * H,), jnp.float32)
    b_hh = 0.1 * jax.random.normal(ks[4], (4 * H,), jnp.float32)
    w_out = 0.1 * jax.random.normal(ks[5], (H, O), jnp.float32)
    b_out = 0.1 * jax.random.normal(ks[6], (O,), jnp.float32)

    tokens = jax.random.randint(ks[7], (B, T), 2, vocab_size, dtype=jnp.int32)
    tokens = tokens.at[1, 7:].set(1)             # trailing padding on sequence 1

    logits = lstm_classifier_forward(tokens, emb, w_ih, w_hh, b_ih, b_hh,
                                     w_out, b_out)
    logits = jax.block_until_ready(logits)

    ref = _reference_forward(tokens, emb, w_ih, w_hh, b_ih, b_hh, w_out, b_out)
    assert logits.shape == (B, O)
    err = jnp.max(jnp.abs(logits - ref))
    assert jnp.allclose(logits, ref, atol=2e-2, rtol=2e-2), f"max abs diff {err}"

    print("KERNEL_OK")
</pallas_src>

<mosaic_0001>
module attributes {stable_mosaic.version = 11 : i64} {
  func.func @_lstm_classifier_kernel(%arg0: i32, %arg1: i32, %arg2: memref<16x1xi32, #tpu.memory_space<vmem>>, %arg3: memref<1x1x192x16xbf16, #tpu.memory_space<vmem>>, %arg4: memref<16x128xbf16, #tpu.memory_space<vmem>>, %arg5: memref<32x128xbf16, #tpu.memory_space<vmem>>, %arg6: memref<1x128xf32, #tpu.memory_space<vmem>>, %arg7: memref<32x128xbf16, #tpu.memory_space<vmem>>, %arg8: memref<1x128xf32, #tpu.memory_space<vmem>>, %arg9: memref<16x128xf32, #tpu.memory_space<vmem>>, %arg10: memref<192x128xf32, #tpu.memory_space<vmem>>, %arg11: memref<16x32xf32, #tpu.memory_space<vmem>>, %arg12: memref<16x32xf32, #tpu.memory_space<vmem>>, %arg13: memref<16x32xf32, #tpu.memory_space<vmem>>) attributes {dimension_semantics = [#tpu.dimension_semantics<parallel>, #tpu.dimension_semantics<arbitrary>], iteration_bounds = array<i64: 1, 1>, scalar_prefetch = 0 : i64, scratch_operands = 4 : i64, tpu.core_type = #tpu.core_type<tc>, window_params = [{transform_indices = @transform_0, window_bounds = array<i64: 16, 1>}, {transform_indices = @transform_1, window_bounds = array<i64: 1, 1, 192, 16>}, {pipeline_mode = #tpu.pipeline_mode<synchronous>, transform_indices = @transform_2, window_bounds = array<i64: 16, 128>}, {pipeline_mode = #tpu.pipeline_mode<synchronous>, transform_indices = @transform_3, window_bounds = array<i64: 32, 128>}, {pipeline_mode = #tpu.pipeline_mode<synchronous>, transform_indices = @transform_4, window_bounds = array<i64: 1, 128>}, {pipeline_mode = #tpu.pipeline_mode<synchronous>, transform_indices = @transform_5, window_bounds = array<i64: 32, 128>}, {pipeline_mode = #tpu.pipeline_mode<synchronous>, transform_indices = @transform_6, window_bounds = array<i64: 1, 128>}, {transform_indices = @transform_7, window_bounds = array<i64: 16, 128>}]} {
    %c0_i32 = arith.constant 0 : i32
    %0 = arith.cmpi eq, %arg1, %c0_i32 : i32
    %1 = arith.extui %0 : i1 to i32
    %c0_i32_0 = arith.constant 0 : i32
    %2 = arith.cmpi ne, %1, %c0_i32_0 : i32
    scf.if %2 {
      %cst_90 = arith.constant 0.000000e+00 : f32
      %443 = vector.broadcast %cst_90 : f32 to vector<16x32xf32>
      %c0_91 = arith.constant 0 : index
      %c0_92 = arith.constant 0 : index
      %444 = vector.load %arg11[%c0_91, %c0_92] : memref<16x32xf32, #tpu.memory_space<vmem>>, vector<16x32xf32>
      tpu.vector_store %arg11[%c0_91, %c0_92], %443 {strides = array<i32>} : memref<16x32xf32, #tpu.memory_space<vmem>>, vector<16x32xf32>,
      %cst_93 = arith.constant 0.000000e+00 : f32
      %445 = vector.broadcast %cst_93 : f32 to vector<16x32xf32>
      %c0_94 = arith.constant 0 : index
      %c0_95 = arith.constant 0 : index
      %446 = vector.load %arg12[%c0_94, %c0_95] : memref<16x32xf32, #tpu.memory_space<vmem>>, vector<16x32xf32>
      tpu.vector_store %arg12[%c0_94, %c0_95], %445 {strides = array<i32>} : memref<16x32xf32, #tpu.memory_space<vmem>>, vector<16x32xf32>,
      %cst_96 = arith.constant 0.000000e+00 : f32
      %447 = vector.broadcast %cst_96 : f32 to vector<16x32xf32>
      %c0_97 = arith.constant 0 : index
      %c0_98 = arith.constant 0 : index
      %448 = vector.load %arg13[%c0_97, %c0_98] : memref<16x32xf32, #tpu.memory_space<vmem>>, vector<16x32xf32>
      tpu.vector_store %arg13[%c0_97, %c0_98], %447 {strides = array<i32>} : memref<16x32xf32, #tpu.memory_space<vmem>>, vector<16x32xf32>,
    } else {
    }
    %c0 = arith.constant 0 : index
    %c0_1 = arith.constant 0 : index
    %c0_2 = arith.constant 0 : index
    %c0_3 = arith.constant 0 : index
    %3 = vector.load %arg3[%c0, %c0_1, %c0_2, %c0_3] : memref<1x1x192x16xbf16, #tpu.memory_space<vmem>>, vector<1x1x192x16xbf16>
    %4 = vector.shape_cast %3 : vector<1x1x192x16xbf16> to vector<192x16xbf16>
    %c0_4 = arith.constant 0 : index
    %c0_5 = arith.constant 0 : index
    %5 = vector.load %arg4[%c0_4, %c0_5] : memref<16x128xbf16, #tpu.memory_space<vmem>>, vector<16x128xbf16>
    %cst = arith.constant dense<0.000000e+00> : vector<192x128xf32>
    %6 = tpu.matmul %4, %5, %cst {dimension_numbers = #tpu.dot_dimension_numbers<[1], [0], [0], [1], [0, 0, 1, 1], [], []>} : vector<192x16xbf16>, vector<16x128xbf16>, vector<192x128xf32> -> vector<192x128xf32>
    %c0_6 = arith.constant 0 : index
    %c0_7 = arith.constant 0 : index
    %7 = vector.load %arg6[%c0_6, %c0_7] : memref<1x128xf32, #tpu.memory_space<vmem>>, vector<1x128xf32>
    %8 = vector.broadcast %7 : vector<1x128xf32> to vector<192x128xf32>
    %9 = arith.addf %6, %8 : vector<192x128xf32>
    %c0_8 = arith.constant 0 : index
    %c0_9 = arith.constant 0 : index
    %10 = vector.load %arg10[%c0_8, %c0_9] : memref<192x128xf32, #tpu.memory_space<vmem>>, vector<192x128xf32>
    tpu.vector_store %arg10[%c0_8, %c0_9], %9 {strides = array<i32>} : memref<192x128xf32, #tpu.memory_space<vmem>>, vector<192x128xf32>,
    %c0_10 = arith.constant 0 : index
    %c0_11 = arith.constant 0 : index
    %11 = vector.load %arg2[%c0_10, %c0_11] : memref<16x1xi32, #tpu.memory_space<vmem>>, vector<16x1xi32>
    %c0_12 = arith.constant 0 : index
    %c0_13 = arith.constant 0 : index
    %12 = vector.load %arg5[%c0_12, %c0_13] : memref<32x128xbf16, #tpu.memory_space<vmem>>, vector<32x128xbf16>
    %c12_i32 = arith.constant 12 : i32
    %13 = arith.muli %arg1, %c12_i32 : i32
    %c0_14 = arith.constant 0 : index
    %c0_15 = arith.constant 0 : index
    %14 = vector.load %arg11[%c0_14, %c0_15] : memref<16x32xf32, #tpu.memory_space<vmem>>, vector<16x32xf32>
    %c0_16 = arith.constant 0 : index
    %c0_17 = arith.constant 0 : index
    %15 = vector.load %arg12[%c0_16, %c0_17] : memref<16x32xf32, #tpu.memory_space<vmem>>, vector<16x32xf32>
    %c0_18 = arith.constant 0 : index
    %c0_19 = arith.constant 0 : index
    %16 = vector.load %arg13[%c0_18, %c0_19] : memref<16x32xf32, #tpu.memory_space<vmem>>, vector<16x32xf32>
    %c0_20 = arith.constant 0 : index
    %c0_21 = arith.constant 0 : index
    %17 = vector.load %arg10[%c0_20, %c0_21] : memref<192x128xf32, #tpu.memory_space<vmem>>, vector<16x128xf32>
    %18 = arith.truncf %14 : vector<16x32xf32> to vector<16x32xbf16>
    %cst_22 = arith.constant dense<0.000000e+00> : vector<16x128xf32>
    %19 = tpu.matmul %18, %12, %cst_22 {dimension_numbers = #tpu.dot_dimension_numbers<[1], [0], [0], [1], [0, 0, 1, 1], [], []>} : vector<16x32xbf16>, vector<32x128xbf16>, vector<16x128xf32> -> vector<16x128xf32>
    %20 = arith.addf %17, %19 : vector<16x128xf32>
    %21 = vector.extract_strided_slice %20 {offsets = [0, 0], sizes = [16, 32], strides = [1, 1]} : vector<16x128xf32> to vector<16x32xf32>
    %22 = arith.negf %21 : vector<16x32xf32>
    %23 = math.exp %22 : vector<16x32xf32>
    %cst_23 = arith.constant 1.000000e+00 : f32
    %24 = vector.broadcast %cst_23 : f32 to vector<16x32xf32>
    %25 = arith.addf %24, %23 : vector<16x32xf32>
    %26 = arith.divf %24, %25 : vector<16x32xf32>
    %27 = vector.extract_strided_slice %20 {offsets = [0, 32], sizes = [16, 32], strides = [1, 1]} : vector<16x128xf32> to vector<16x32xf32>
    %28 = arith.negf %27 : vector<16x32xf32>
    %29 = math.exp %28 : vector<16x32xf32>
    %cst_24 = arith.constant 1.000000e+00 : f32
    %30 = vector.broadcast %cst_24 : f32 to vector<16x32xf32>
    %31 = arith.addf %30, %29 : vector<16x32xf32>
    %32 = arith.divf %30, %31 : vector<16x32xf32>
    %33 = vector.extract_strided_slice %20 {offsets = [0, 64], sizes = [16, 32], strides = [1, 1]} : vector<16x128xf32> to vector<16x32xf32>
    %34 = math.tanh %33 : vector<16x32xf32>
    %35 = vector.extract_strided_slice %20 {offsets = [0, 96], sizes = [16, 32], strides = [1, 1]} : vector<16x128xf32> to vector<16x32xf32>
    %36 = arith.negf %35 : vector<16x32xf32>
    %37 = math.exp %36 : vector<16x32xf32>
    %cst_25 = arith.constant 1.000000e+00 : f32
    %38 = vector.broadcast %cst_25 : f32 to vector<16x32xf32>
    %39 = arith.addf %38, %37 : vector<16x32xf32>
    %40 = arith.divf %38, %39 : vector<16x32xf32>
    %41 = arith.mulf %32, %15 : vector<16x32xf32>
    %42 = arith.mulf %26, %34 : vector<16x32xf32>
    %43 = arith.addf %41, %42 : vector<16x32xf32>
    %44 = math.tanh %43 : vector<16x32xf32>
    %45 = arith.mulf %40, %44 : vector<16x32xf32>
    %c0_i32_26 = arith.constant 0 : i32
    %46 = arith.addi %13, %c0_i32_26 : i32
    %47 = vector.broadcast %46 : i32 to vector<16x1xi32>
    %48 = arith.cmpi eq, %11, %47 : vector<16x1xi32>
    %49 = vector.shape_cast %48 : vector<16x1xi1> to vector<16x1xi1>
    %50 = vector.broadcast %49 : vector<16x1xi1> to vector<16x32xi1>
    %51 = arith.select %50, %45, %16 : vector<16x32xi1>, vector<16x32xf32>
    %c16 = arith.constant 16 : index
    %c0_27 = arith.constant 0 : index
    %52 = vector.load %arg10[%c16, %c0_27] : memref<192x128xf32, #tpu.memory_space<vmem>>, vector<16x128xf32>
    %53 = arith.truncf %45 : vector<16x32xf32> to vector<16x32xbf16>
    %cst_28 = arith.constant dense<0.000000e+00> : vector<16x128xf32>
    %54 = tpu.matmul %53, %12, %cst_28 {dimension_numbers = #tpu.dot_dimension_numbers<[1], [0], [0], [1], [0, 0, 1, 1], [], []>} : vector<16x32xbf16>, vector<32x128xbf16>, vector<16x128xf32> -> vector<16x128xf32>
    %55 = arith.addf %52, %54 : vector<16x128xf32>
    %56 = vector.extract_strided_slice %55 {offsets = [0, 0], sizes = [16, 32], strides = [1, 1]} : vector<16x128xf32> to vector<16x32xf32>
    %57 = arith.negf %56 : vector<16x32xf32>
    %58 = math.exp %57 : vector<16x32xf32>
    %cst_29 = arith.constant 1.000000e+00 : f32
    %59 = vector.broadcast %cst_29 : f32 to vector<16x32xf32>
    %60 = arith.addf %59, %58 : vector<16x32xf32>
    %61 = arith.divf %59, %60 : vector<16x32xf32>
    %62 = vector.extract_strided_slice %55 {offsets = [0, 32], sizes = [16, 32], strides = [1, 1]} : vector<16x128xf32> to vector<16x32xf32>
    %63 = arith.negf %62 : vector<16x32xf32>
    %64 = math.exp %63 : vector<16x32xf32>
    %cst_30 = arith.constant 1.000000e+00 : f32
    %65 = vector.broadcast %cst_30 : f32 to vector<16x32xf32>
    %66 = arith.addf %65, %64 : vector<16x32xf32>
    %67 = arith.divf %65, %66 : vector<16x32xf32>
    %68 = vector.extract_strided_slice %55 {offsets = [0, 64], sizes = [16, 32], strides = [1, 1]} : vector<16x128xf32> to vector<16x32xf32>
    %69 = math.tanh %68 : vector<16x32xf32>
    %70 = vector.extract_strided_slice %55 {offsets = [0, 96], sizes = [16, 32], strides = [1, 1]} : vector<16x128xf32> to vector<16x32xf32>
    %71 = arith.negf %70 : vector<16x32xf32>
    %72 = math.exp %71 : vector<16x32xf32>
    %cst_31 = arith.constant 1.000000e+00 : f32
    %73 = vector.broadcast %cst_31 : f32 to vector<16x32xf32>
    %74 = arith.addf %73, %72 : vector<16x32xf32>
    %75 = arith.divf %73, %74 : vector<16x32xf32>
    %76 = arith.mulf %67, %43 : vector<16x32xf32>
    %77 = arith.mulf %61, %69 : vector<16x32xf32>
    %78 = arith.addf %76, %77 : vector<16x32xf32>
    %79 = math.tanh %78 : vector<16x32xf32>
    %80 = arith.mulf %75, %79 : vector<16x32xf32>
    %c1_i32 = arith.constant 1 : i32
    %81 = arith.addi %13, %c1_i32 : i32
    %82 = vector.broadcast %81 : i32 to vector<16x1xi32>
    %83 = arith.cmpi eq, %11, %82 : vector<16x1xi32>
    %84 = vector.shape_cast %83 : vector<16x1xi1> to vector<16x1xi1>
    %85 = vector.broadcast %84 : vector<16x1xi1> to vector<16x32xi1>
    %86 = arith.select %85, %80, %51 : vector<16x32xi1>, vector<16x32xf32>
    %c32 = arith.constant 32 : index
    %c0_32 = arith.constant 0 : index
    %87 = vector.load %arg10[%c32, %c0_32] : memref<192x128xf32, #tpu.memory_space<vmem>>, vector<16x128xf32>
    %88 = arith.truncf %80 : vector<16x32xf32> to vector<16x32xbf16>
    %cst_33 = arith.constant dense<0.000000e+00> : vector<16x128xf32>
    %89 = tpu.matmul %88, %12, %cst_33 {dimension_numbers = #tpu.dot_dimension_numbers<[1], [0], [0], [1], [0, 0, 1, 1], [], []>} : vector<16x32xbf16>, vector<32x128xbf16>, vector<16x128xf32> -> vector<16x128xf32>
    %90 = arith.addf %87, %89 : vector<16x128xf32>
    %91 = vector.extract_strided_slice %90 {offsets = [0, 0], sizes = [16, 32], strides = [1, 1]} : vector<16x128xf32> to vector<16x32xf32>
    %92 = arith.negf %91 : vector<16x32xf32>
    %93 = math.exp %92 : vector<16x32xf32>
    %cst_34 = arith.constant 1.000000e+00 : f32
    %94 = vector.broadcast %cst_34 : f32 to vector<16x32xf32>
    %95 = arith.addf %94, %93 : vector<16x32xf32>
    %96 = arith.divf %94, %95 : vector<16x32xf32>
    %97 = vector.extract_strided_slice %90 {offsets = [0, 32], sizes = [16, 32], strides = [1, 1]} : vector<16x128xf32> to vector<16x32xf32>
    %98 = arith.negf %97 : vector<16x32xf32>
    %99 = math.exp %98 : vector<16x32xf32>
    %cst_35 = arith.constant 1.000000e+00 : f32
    %100 = vector.broadcast %cst_35 : f32 to vector<16x32xf32>
    %101 = arith.addf %100, %99 : vector<16x32xf32>
    %102 = arith.divf %100, %101 : vector<16x32xf32>
    %103 = vector.extract_strided_slice %90 {offsets = [0, 64], sizes = [16, 32], strides = [1, 1]} : vector<16x128xf32> to vector<16x32xf32>
    %104 = math.tanh %103 : vector<16x32xf32>
    %105 = vector.extract_strided_slice %90 {offsets = [0, 96], sizes = [16, 32], strides = [1, 1]} : vector<16x128xf32> to vector<16x32xf32>
    %106 = arith.negf %105 : vector<16x32xf32>
    %107 = math.exp %106 : vector<16x32xf32>
    %cst_36 = arith.constant 1.000000e+00 : f32
    %108 = vector.broadcast %cst_36 : f32 to vector<16x32xf32>
    %109 = arith.addf %108, %107 : vector<16x32xf32>
    %110 = arith.divf %108, %109 : vector<16x32xf32>
    %111 = arith.mulf %102, %78 : vector<16x32xf32>
    %112 = arith.mulf %96, %104 : vector<16x32xf32>
    %113 = arith.addf %111, %112 : vector<16x32xf32>
    %114 = math.tanh %113 : vector<16x32xf32>
    %115 = arith.mulf %110, %114 : vector<16x32xf32>
    %c2_i32 = arith.constant 2 : i32
    %116 = arith.addi %13, %c2_i32 : i32
    %117 = vector.broadcast %116 : i32 to vector<16x1xi32>
    %118 = arith.cmpi eq, %11, %117 : vector<16x1xi32>
    %119 = vector.shape_cast %118 : vector<16x1xi1> to vector<16x1xi1>
    %120 = vector.broadcast %119 : vector<16x1xi1> to vector<16x32xi1>
    %121 = arith.select %120, %115, %86 : vector<16x32xi1>, vector<16x32xf32>
    %c48 = arith.constant 48 : index
    %c0_37 = arith.constant 0 : index
    %122 = vector.load %arg10[%c48, %c0_37] : memref<192x128xf32, #tpu.memory_space<vmem>>, vector<16x128xf32>
    %123 = arith.truncf %115 : vector<16x32xf32> to vector<16x32xbf16>
    %cst_38 = arith.constant dense<0.000000e+00> : vector<16x128xf32>
    %124 = tpu.matmul %123, %12, %cst_38 {dimension_numbers = #tpu.dot_dimension_numbers<[1], [0], [0], [1], [0, 0, 1, 1], [], []>} : vector<16x32xbf16>, vector<32x128xbf16>, vector<16x128xf32> -> vector<16x128xf32>
    %125 = arith.addf %122, %124 : vector<16x128xf32>
    %126 = vector.extract_strided_slice %125 {offsets = [0, 0], sizes = [16, 32], strides = [1, 1]} : vector<16x128xf32> to vector<16x32xf32>
    %127 = arith.negf %126 : vector<16x32xf32>
    %128 = math.exp %127 : vector<16x32xf32>
    %cst_39 = arith.constant 1.000000e+00 : f32
    %129 = vector.broadcast %cst_39 : f32 to vector<16x32xf32>
    %130 = arith.addf %129, %128 : vector<16x32xf32>
    %131 = arith.divf %129, %130 : vector<16x32xf32>
    %132 = vector.extract_strided_slice %125 {offsets = [0, 32], sizes = [16, 32], strides = [1, 1]} : vector<16x128xf32> to vector<16x32xf32>
    %133 = arith.negf %132 : vector<16x32xf32>
    %134 = math.exp %133 : vector<16x32xf32>
    %cst_40 = arith.constant 1.000000e+00 : f32
    %135 = vector.broadcast %cst_40 : f32 to vector<16x32xf32>
    %136 = arith.addf %135, %134 : vector<16x32xf32>
    %137 = arith.divf %135, %136 : vector<16x32xf32>
    %138 = vector.extract_strided_slice %125 {offsets = [0, 64], sizes = [16, 32], strides = [1, 1]} : vector<16x128xf32> to vector<16x32xf32>
    %139 = math.tanh %138 : vector<16x32xf32>
    %140 = vector.extract_strided_slice %125 {offsets = [0, 96], sizes = [16, 32], strides = [1, 1]} : vector<16x128xf32> to vector<16x32xf32>
    %141 = arith.negf %140 : vector<16x32xf32>
    %142 = math.exp %141 : vector<16x32xf32>
    %cst_41 = arith.constant 1.000000e+00 : f32
    %143 = vector.broadcast %cst_41 : f32 to vector<16x32xf32>
    %144 = arith.addf %143, %142 : vector<16x32xf32>
    %145 = arith.divf %143, %144 : vector<16x32xf32>
    %146 = arith.mulf %137, %113 : vector<16x32xf32>
    %147 = arith.mulf %131, %139 : vector<16x32xf32>
    %148 = arith.addf %146, %147 : vector<16x32xf32>
    %149 = math.tanh %148 : vector<16x32xf32>
    %150 = arith.mulf %145, %149 : vector<16x32xf32>
    %c3_i32 = arith.constant 3 : i32
    %151 = arith.addi %13, %c3_i32 : i32
    %152 = vector.broadcast %151 : i32 to vector<16x1xi32>
    %153 = arith.cmpi eq, %11, %152 : vector<16x1xi32>
    %154 = vector.shape_cast %153 : vector<16x1xi1> to vector<16x1xi1>
    %155 = vector.broadcast %154 : vector<16x1xi1> to vector<16x32xi1>
    %156 = arith.select %155, %150, %121 : vector<16x32xi1>, vector<16x32xf32>
    %c64 = arith.constant 64 : index
    %c0_42 = arith.constant 0 : index
    %157 = vector.load %arg10[%c64, %c0_42] : memref<192x128xf32, #tpu.memory_space<vmem>>, vector<16x128xf32>
    %158 = arith.truncf %150 : vector<16x32xf32> to vector<16x32xbf16>
    %cst_43 = arith.constant dense<0.000000e+00> : vector<16x128xf32>
    %159 = tpu.matmul %158, %12, %cst_43 {dimension_numbers = #tpu.dot_dimension_numbers<[1], [0], [0], [1], [0, 0, 1, 1], [], []>} : vector<16x32xbf16>, vector<32x128xbf16>, vector<16x128xf32> -> vector<16x128xf32>
    %160 = arith.addf %157, %159 : vector<16x128xf32>
    %161 = vector.extract_strided_slice %160 {offsets = [0, 0], sizes = [16, 32], strides = [1, 1]} : vector<16x128xf32> to vector<16x32xf32>
    %162 = arith.negf %161 : vector<16x32xf32>
    %163 = math.exp %162 : vector<16x32xf32>
    %cst_44 = arith.constant 1.000000e+00 : f32
    %164 = vector.broadcast %cst_44 : f32 to vector<16x32xf32>
    %165 = arith.addf %164, %163 : vector<16x32xf32>
    %166 = arith.divf %164, %165 : vector<16x32xf32>
    %167 = vector.extract_strided_slice %160 {offsets = [0, 32], sizes = [16, 32], strides = [1, 1]} : vector<16x128xf32> to vector<16x32xf32>
    %168 = arith.negf %167 : vector<16x32xf32>
    %169 = math.exp %168 : vector<16x32xf32>
    %cst_45 = arith.constant 1.000000e+00 : f32
    %170 = vector.broadcast %cst_45 : f32 to vector<16x32xf32>
    %171 = arith.addf %170, %169 : vector<16x32xf32>
    %172 = arith.divf %170, %171 : vector<16x32xf32>
    %173 = vector.extract_strided_slice %160 {offsets = [0, 64], sizes = [16, 32], strides = [1, 1]} : vector<16x128xf32> to vector<16x32xf32>
    %174 = math.tanh %173 : vector<16x32xf32>
    %175 = vector.extract_strided_slice %160 {offsets = [0, 96], sizes = [16, 32], strides = [1, 1]} : vector<16x128xf32> to vector<16x32xf32>
    %176 = arith.negf %175 : vector<16x32xf32>
    %177 = math.exp %176 : vector<16x32xf32>
    %cst_46 = arith.constant 1.000000e+00 : f32
    %178 = vector.broadcast %cst_46 : f32 to vector<16x32xf32>
    %179 = arith.addf %178, %177 : vector<16x32xf32>
    %180 = arith.divf %178, %179 : vector<16x32xf32>
    %181 = arith.mulf %172, %148 : vector<16x32xf32>
    %182 = arith.mulf %166, %174 : vector<16x32xf32>
    %183 = arith.addf %181, %182 : vector<16x32xf32>
    %184 = math.tanh %183 : vector<16x32xf32>
    %185 = arith.mulf %180, %184 : vector<16x32xf32>
    %c4_i32 = arith.constant 4 : i32
    %186 = arith.addi %13, %c4_i32 : i32
    %187 = vector.broadcast %186 : i32 to vector<16x1xi32>
    %188 = arith.cmpi eq, %11, %187 : vector<16x1xi32>
    %189 = vector.shape_cast %188 : vector<16x1xi1> to vector<16x1xi1>
    %190 = vector.broadcast %189 : vector<16x1xi1> to vector<16x32xi1>
    %191 = arith.select %190, %185, %156 : vector<16x32xi1>, vector<16x32xf32>
    %c80 = arith.constant 80 : index
    %c0_47 = arith.constant 0 : index
    %192 = vector.load %arg10[%c80, %c0_47] : memref<192x128xf32, #tpu.memory_space<vmem>>, vector<16x128xf32>
    %193 = arith.truncf %185 : vector<16x32xf32> to vector<16x32xbf16>
    %cst_48 = arith.constant dense<0.000000e+00> : vector<16x128xf32>
    %194 = tpu.matmul %193, %12, %cst_48 {dimension_numbers = #tpu.dot_dimension_numbers<[1], [0], [0], [1], [0, 0, 1, 1], [], []>} : vector<16x32xbf16>, vector<32x128xbf16>, vector<16x128xf32> -> vector<16x128xf32>
    %195 = arith.addf %192, %194 : vector<16x128xf32>
    %196 = vector.extract_strided_slice %195 {offsets = [0, 0], sizes = [16, 32], strides = [1, 1]} : vector<16x128xf32> to vector<16x32xf32>
    %197 = arith.negf %196 : vector<16x32xf32>
    %198 = math.exp %197 : vector<16x32xf32>
    %cst_49 = arith.constant 1.000000e+00 : f32
    %199 = vector.broadcast %cst_49 : f32 to vector<16x32xf32>
    %200 = arith.addf %199, %198 : vector<16x32xf32>
    %201 = arith.divf %199, %200 : vector<16x32xf32>
    %202 = vector.extract_strided_slice %195 {offsets = [0, 32], sizes = [16, 32], strides = [1, 1]} : vector<16x128xf32> to vector<16x32xf32>
    %203 = arith.negf %202 : vector<16x32xf32>
    %204 = math.exp %203 : vector<16x32xf32>
    %cst_50 = arith.constant 1.000000e+00 : f32
    %205 = vector.broadcast %cst_50 : f32 to vector<16x32xf32>
    %206 = arith.addf %205, %204 : vector<16x32xf32>
    %207 = arith.divf %205, %206 : vector<16x32xf32>
    %208 = vector.extract_strided_slice %195 {offsets = [0, 64], sizes = [16, 32], strides = [1, 1]} : vector<16x128xf32> to vector<16x32xf32>
    %209 = math.tanh %208 : vector<16x32xf32>
    %210 = vector.extract_strided_slice %195 {offsets = [0, 96], sizes = [16, 32], strides = [1, 1]} : vector<16x128xf32> to vector<16x32xf32>
    %211 = arith.negf %210 : vector<16x32xf32>
    %212 = math.exp %211 : vector<16x32xf32>
    %cst_51 = arith.constant 1.000000e+00 : f32
    %213 = vector.broadcast %cst_51 : f32 to vector<16x32xf32>
    %214 = arith.addf %213, %212 : vector<16x32xf32>
    %215 = arith.divf %213, %214 : vector<16x32xf32>
    %216 = arith.mulf %207, %183 : vector<16x32xf32>
    %217 = arith.mulf %201, %209 : vector<16x32xf32>
    %218 = arith.addf %216, %217 : vector<16x32xf32>
    %219 = math.tanh %218 : vector<16x32xf32>
    %220 = arith.mulf %215, %219 : vector<16x32xf32>
    %c5_i32 = arith.constant 5 : i32
    %221 = arith.addi %13, %c5_i32 : i32
    %222 = vector.broadcast %221 : i32 to vector<16x1xi32>
    %223 = arith.cmpi eq, %11, %222 : vector<16x1xi32>
    %224 = vector.shape_cast %223 : vector<16x1xi1> to vector<16x1xi1>
    %225 = vector.broadcast %224 : vector<16x1xi1> to vector<16x32xi1>
    %226 = arith.select %225, %220, %191 : vector<16x32xi1>, vector<16x32xf32>
    %c96 = arith.constant 96 : index
    %c0_52 = arith.constant 0 : index
    %227 = vector.load %arg10[%c96, %c0_52] : memref<192x128xf32, #tpu.memory_space<vmem>>, vector<16x128xf32>
    %228 = arith.truncf %220 : vector<16x32xf32> to vector<16x32xbf16>
    %cst_53 = arith.constant dense<0.000000e+00> : vector<16x128xf32>
    %229 = tpu.matmul %228, %12, %cst_53 {dimension_numbers = #tpu.dot_dimension_numbers<[1], [0], [0], [1], [0, 0, 1, 1], [], []>} : vector<16x32xbf16>, vector<32x128xbf16>, vector<16x128xf32> -> vector<16x128xf32>
    %230 = arith.addf %227, %229 : vector<16x128xf32>
    %231 = vector.extract_strided_slice %230 {offsets = [0, 0], sizes = [16, 32], strides = [1, 1]} : vector<16x128xf32> to vector<16x32xf32>
    %232 = arith.negf %231 : vector<16x32xf32>
    %233 = math.exp %232 : vector<16x32xf32>
    %cst_54 = arith.constant 1.000000e+00 : f32
    %234 = vector.broadcast %cst_54 : f32 to vector<16x32xf32>
    %235 = arith.addf %234, %233 : vector<16x32xf32>
    %236 = arith.divf %234, %235 : vector<16x32xf32>
    %237 = vector.extract_strided_slice %230 {offsets = [0, 32], sizes = [16, 32], strides = [1, 1]} : vector<16x128xf32> to vector<16x32xf32>
    %238 = arith.negf %237 : vector<16x32xf32>
    %239 = math.exp %238 : vector<16x32xf32>
    %cst_55 = arith.constant 1.000000e+00 : f32
    %240 = vector.broadcast %cst_55 : f32 to vector<16x32xf32>
    %241 = arith.addf %240, %239 : vector<16x32xf32>
    %242 = arith.divf %240, %241 : vector<16x32xf32>
    %243 = vector.extract_strided_slice %230 {offsets = [0, 64], sizes = [16, 32], strides = [1, 1]} : vector<16x128xf32> to vector<16x32xf32>
    %244 = math.tanh %243 : vector<16x32xf32>
    %245 = vector.extract_strided_slice %230 {offsets = [0, 96], sizes = [16, 32], strides = [1, 1]} : vector<16x128xf32> to vector<16x32xf32>
    %246 = arith.negf %245 : vector<16x32xf32>
    %247 = math.exp %246 : vector<16x32xf32>
    %cst_56 = arith.constant 1.000000e+00 : f32
    %248 = vector.broadcast %cst_56 : f32 to vector<16x32xf32>
    %249 = arith.addf %248, %247 : vector<16x32xf32>
    %250 = arith.divf %248, %249 : vector<16x32xf32>
    %251 = arith.mulf %242, %218 : vector<16x32xf32>
    %252 = arith.mulf %236, %244 : vector<16x32xf32>
    %253 = arith.addf %251, %252 : vector<16x32xf32>
    %254 = math.tanh %253 : vector<16x32xf32>
    %255 = arith.mulf %250, %254 : vector<16x32xf32>
    %c6_i32 = arith.constant 6 : i32
    %256 = arith.addi %13, %c6_i32 : i32
    %257 = vector.broadcast %256 : i32 to vector<16x1xi32>
    %258 = arith.cmpi eq, %11, %257 : vector<16x1xi32>
    %259 = vector.shape_cast %258 : vector<16x1xi1> to vector<16x1xi1>
    %260 = vector.broadcast %259 : vector<16x1xi1> to vector<16x32xi1>
    %261 = arith.select %260, %255, %226 : vector<16x32xi1>, vector<16x32xf32>
    %c112 = arith.constant 112 : index
    %c0_57 = arith.constant 0 : index
    %262 = vector.load %arg10[%c112, %c0_57] : memref<192x128xf32, #tpu.memory_space<vmem>>, vector<16x128xf32>
    %263 = arith.truncf %255 : vector<16x32xf32> to vector<16x32xbf16>
    %cst_58 = arith.constant dense<0.000000e+00> : vector<16x128xf32>
    %264 = tpu.matmul %263, %12, %cst_58 {dimension_numbers = #tpu.dot_dimension_numbers<[1], [0], [0], [1], [0, 0, 1, 1], [], []>} : vector<16x32xbf16>, vector<32x128xbf16>, vector<16x128xf32> -> vector<16x128xf32>
    %265 = arith.addf %262, %264 : vector<16x128xf32>
    %266 = vector.extract_strided_slice %265 {offsets = [0, 0], sizes = [16, 32], strides = [1, 1]} : vector<16x128xf32> to vector<16x32xf32>
    %267 = arith.negf %266 : vector<16x32xf32>
    %268 = math.exp %267 : vector<16x32xf32>
    %cst_59 = arith.constant 1.000000e+00 : f32
    %269 = vector.broadcast %cst_59 : f32 to vector<16x32xf32>
    %270 = arith.addf %269, %268 : vector<16x32xf32>
    %271 = arith.divf %269, %270 : vector<16x32xf32>
    %272 = vector.extract_strided_slice %265 {offsets = [0, 32], sizes = [16, 32], strides = [1, 1]} : vector<16x128xf32> to vector<16x32xf32>
    %273 = arith.negf %272 : vector<16x32xf32>
    %274 = math.exp %273 : vector<16x32xf32>
    %cst_60 = arith.constant 1.000000e+00 : f32
    %275 = vector.broadcast %cst_60 : f32 to vector<16x32xf32>
    %276 = arith.addf %275, %274 : vector<16x32xf32>
    %277 = arith.divf %275, %276 : vector<16x32xf32>
    %278 = vector.extract_strided_slice %265 {offsets = [0, 64], sizes = [16, 32], strides = [1, 1]} : vector<16x128xf32> to vector<16x32xf32>
    %279 = math.tanh %278 : vector<16x32xf32>
    %280 = vector.extract_strided_slice %265 {offsets = [0, 96], sizes = [16, 32], strides = [1, 1]} : vector<16x128xf32> to vector<16x32xf32>
    %281 = arith.negf %280 : vector<16x32xf32>
    %282 = math.exp %281 : vector<16x32xf32>
    %cst_61 = arith.constant 1.000000e+00 : f32
    %283 = vector.broadcast %cst_61 : f32 to vector<16x32xf32>
    %284 = arith.addf %283, %282 : vector<16x32xf32>
    %285 = arith.divf %283, %284 : vector<16x32xf32>
    %286 = arith.mulf %277, %253 : vector<16x32xf32>
    %287 = arith.mulf %271, %279 : vector<16x32xf32>
    %288 = arith.addf %286, %287 : vector<16x32xf32>
    %289 = math.tanh %288 : vector<16x32xf32>
    %290 = arith.mulf %285, %289 : vector<16x32xf32>
    %c7_i32 = arith.constant 7 : i32
    %291 = arith.addi %13, %c7_i32 : i32
    %292 = vector.broadcast %291 : i32 to vector<16x1xi32>
    %293 = arith.cmpi eq, %11, %292 : vector<16x1xi32>
    %294 = vector.shape_cast %293 : vector<16x1xi1> to vector<16x1xi1>
    %295 = vector.broadcast %294 : vector<16x1xi1> to vector<16x32xi1>
    %296 = arith.select %295, %290, %261 : vector<16x32xi1>, vector<16x32xf32>
    %c128 = arith.constant 128 : index
    %c0_62 = arith.constant 0 : index
    %297 = vector.load %arg10[%c128, %c0_62] : memref<192x128xf32, #tpu.memory_space<vmem>>, vector<16x128xf32>
    %298 = arith.truncf %290 : vector<16x32xf32> to vector<16x32xbf16>
    %cst_63 = arith.constant dense<0.000000e+00> : vector<16x128xf32>
    %299 = tpu.matmul %298, %12, %cst_63 {dimension_numbers = #tpu.dot_dimension_numbers<[1], [0], [0], [1], [0, 0, 1, 1], [], []>} : vector<16x32xbf16>, vector<32x128xbf16>, vector<16x128xf32> -> vector<16x128xf32>
    %300 = arith.addf %297, %299 : vector<16x128xf32>
    %301 = vector.extract_strided_slice %300 {offsets = [0, 0], sizes = [16, 32], strides = [1, 1]} : vector<16x128xf32> to vector<16x32xf32>
    %302 = arith.negf %301 : vector<16x32xf32>
    %303 = math.exp %302 : vector<16x32xf32>
    %cst_64 = arith.constant 1.000000e+00 : f32
    %304 = vector.broadcast %cst_64 : f32 to vector<16x32xf32>
    %305 = arith.addf %304, %303 : vector<16x32xf32>
    %306 = arith.divf %304, %305 : vector<16x32xf32>
    %307 = vector.extract_strided_slice %300 {offsets = [0, 32], sizes = [16, 32], strides = [1, 1]} : vector<16x128xf32> to vector<16x32xf32>
    %308 = arith.negf %307 : vector<16x32xf32>
    %309 = math.exp %308 : vector<16x32xf32>
    %cst_65 = arith.constant 1.000000e+00 : f32
    %310 = vector.broadcast %cst_65 : f32 to vector<16x32xf32>
    %311 = arith.addf %310, %309 : vector<16x32xf32>
    %312 = arith.divf %310, %311 : vector<16x32xf32>
    %313 = vector.extract_strided_slice %300 {offsets = [0, 64], sizes = [16, 32], strides = [1, 1]} : vector<16x128xf32> to vector<16x32xf32>
    %314 = math.tanh %313 : vector<16x32xf32>
    %315 = vector.extract_strided_slice %300 {offsets = [0, 96], sizes = [16, 32], strides = [1, 1]} : vector<16x128xf32> to vector<16x32xf32>
    %316 = arith.negf %315 : vector<16x32xf32>
    %317 = math.exp %316 : vector<16x32xf32>
    %cst_66 = arith.constant 1.000000e+00 : f32
    %318 = vector.broadcast %cst_66 : f32 to vector<16x32xf32>
    %319 = arith.addf %318, %317 : vector<16x32xf32>
    %320 = arith.divf %318, %319 : vector<16x32xf32>
    %321 = arith.mulf %312, %288 : vector<16x32xf32>
    %322 = arith.mulf %306, %314 : vector<16x32xf32>
    %323 = arith.addf %321, %322 : vector<16x32xf32>
    %324 = math.tanh %323 : vector<16x32xf32>
    %325 = arith.mulf %320, %324 : vector<16x32xf32>
    %c8_i32 = arith.constant 8 : i32
    %326 = arith.addi %13, %c8_i32 : i32
    %327 = vector.broadcast %326 : i32 to vector<16x1xi32>
    %328 = arith.cmpi eq, %11, %327 : vector<16x1xi32>
    %329 = vector.shape_cast %328 : vector<16x1xi1> to vector<16x1xi1>
    %330 = vector.broadcast %329 : vector<16x1xi1> to vector<16x32xi1>
    %331 = arith.select %330, %325, %296 : vector<16x32xi1>, vector<16x32xf32>
    %c144 = arith.constant 144 : index
    %c0_67 = arith.constant 0 : index
    %332 = vector.load %arg10[%c144, %c0_67] : memref<192x128xf32, #tpu.memory_space<vmem>>, vector<16x128xf32>
    %333 = arith.truncf %325 : vector<16x32xf32> to vector<16x32xbf16>
    %cst_68 = arith.constant dense<0.000000e+00> : vector<16x128xf32>
    %334 = tpu.matmul %333, %12, %cst_68 {dimension_numbers = #tpu.dot_dimension_numbers<[1], [0], [0], [1], [0, 0, 1, 1], [], []>} : vector<16x32xbf16>, vector<32x128xbf16>, vector<16x128xf32> -> vector<16x128xf32>
    %335 = arith.addf %332, %334 : vector<16x128xf32>
    %336 = vector.extract_strided_slice %335 {offsets = [0, 0], sizes = [16, 32], strides = [1, 1]} : vector<16x128xf32> to vector<16x32xf32>
    %337 = arith.negf %336 : vector<16x32xf32>
    %338 = math.exp %337 : vector<16x32xf32>
    %cst_69 = arith.constant 1.000000e+00 : f32
    %339 = vector.broadcast %cst_69 : f32 to vector<16x32xf32>
    %340 = arith.addf %339, %338 : vector<16x32xf32>
    %341 = arith.divf %339, %340 : vector<16x32xf32>
    %342 = vector.extract_strided_slice %335 {offsets = [0, 32], sizes = [16, 32], strides = [1, 1]} : vector<16x128xf32> to vector<16x32xf32>
    %343 = arith.negf %342 : vector<16x32xf32>
    %344 = math.exp %343 : vector<16x32xf32>
    %cst_70 = arith.constant 1.000000e+00 : f32
    %345 = vector.broadcast %cst_70 : f32 to vector<16x32xf32>
    %346 = arith.addf %345, %344 : vector<16x32xf32>
    %347 = arith.divf %345, %346 : vector<16x32xf32>
    %348 = vector.extract_strided_slice %335 {offsets = [0, 64], sizes = [16, 32], strides = [1, 1]} : vector<16x128xf32> to vector<16x32xf32>
    %349 = math.tanh %348 : vector<16x32xf32>
    %350 = vector.extract_strided_slice %335 {offsets = [0, 96], sizes = [16, 32], strides = [1, 1]} : vector<16x128xf32> to vector<16x32xf32>
    %351 = arith.negf %350 : vector<16x32xf32>
    %352 = math.exp %351 : vector<16x32xf32>
    %cst_71 = arith.constant 1.000000e+00 : f32
    %353 = vector.broadcast %cst_71 : f32 to vector<16x32xf32>
    %354 = arith.addf %353, %352 : vector<16x32xf32>
    %355 = arith.divf %353, %354 : vector<16x32xf32>
    %356 = arith.mulf %347, %323 : vector<16x32xf32>
    %357 = arith.mulf %341, %349 : vector<16x32xf32>
    %358 = arith.addf %356, %357 : vector<16x32xf32>
    %359 = math.tanh %358 : vector<16x32xf32>
    %360 = arith.mulf %355, %359 : vector<16x32xf32>
    %c9_i32 = arith.constant 9 : i32
    %361 = arith.addi %13, %c9_i32 : i32
    %362 = vector.broadcast %361 : i32 to vector<16x1xi32>
    %363 = arith.cmpi eq, %11, %362 : vector<16x1xi32>
    %364 = vector.shape_cast %363 : vector<16x1xi1> to vector<16x1xi1>
    %365 = vector.broadcast %364 : vector<16x1xi1> to vector<16x32xi1>
    %366 = arith.select %365, %360, %331 : vector<16x32xi1>, vector<16x32xf32>
    %c160 = arith.constant 160 : index
    %c0_72 = arith.constant 0 : index
    %367 = vector.load %arg10[%c160, %c0_72] : memref<192x128xf32, #tpu.memory_space<vmem>>, vector<16x128xf32>
    %368 = arith.truncf %360 : vector<16x32xf32> to vector<16x32xbf16>
    %cst_73 = arith.constant dense<0.000000e+00> : vector<16x128xf32>
    %369 = tpu.matmul %368, %12, %cst_73 {dimension_numbers = #tpu.dot_dimension_numbers<[1], [0], [0], [1], [0, 0, 1, 1], [], []>} : vector<16x32xbf16>, vector<32x128xbf16>, vector<16x128xf32> -> vector<16x128xf32>
    %370 = arith.addf %367, %369 : vector<16x128xf32>
    %371 = vector.extract_strided_slice %370 {offsets = [0, 0], sizes = [16, 32], strides = [1, 1]} : vector<16x128xf32> to vector<16x32xf32>
    %372 = arith.negf %371 : vector<16x32xf32>
    %373 = math.exp %372 : vector<16x32xf32>
    %cst_74 = arith.constant 1.000000e+00 : f32
    %374 = vector.broadcast %cst_74 : f32 to vector<16x32xf32>
    %375 = arith.addf %374, %373 : vector<16x32xf32>
    %376 = arith.divf %374, %375 : vector<16x32xf32>
    %377 = vector.extract_strided_slice %370 {offsets = [0, 32], sizes = [16, 32], strides = [1, 1]} : vector<16x128xf32> to vector<16x32xf32>
    %378 = arith.negf %377 : vector<16x32xf32>
    %379 = math.exp %378 : vector<16x32xf32>
    %cst_75 = arith.constant 1.000000e+00 : f32
    %380 = vector.broadcast %cst_75 : f32 to vector<16x32xf32>
    %381 = arith.addf %380, %379 : vector<16x32xf32>
    %382 = arith.divf %380, %381 : vector<16x32xf32>
    %383 = vector.extract_strided_slice %370 {offsets = [0, 64], sizes = [16, 32], strides = [1, 1]} : vector<16x128xf32> to vector<16x32xf32>
    %384 = math.tanh %383 : vector<16x32xf32>
    %385 = vector.extract_strided_slice %370 {offsets = [0, 96], sizes = [16, 32], strides = [1, 1]} : vector<16x128xf32> to vector<16x32xf32>
    %386 = arith.negf %385 : vector<16x32xf32>
    %387 = math.exp %386 : vector<16x32xf32>
    %cst_76 = arith.constant 1.000000e+00 : f32
    %388 = vector.broadcast %cst_76 : f32 to vector<16x32xf32>
    %389 = arith.addf %388, %387 : vector<16x32xf32>
    %390 = arith.divf %388, %389 : vector<16x32xf32>
    %391 = arith.mulf %382, %358 : vector<16x32xf32>
    %392 = arith.mulf %376, %384 : vector<16x32xf32>
    %393 = arith.addf %391, %392 : vector<16x32xf32>
    %394 = math.tanh %393 : vector<16x32xf32>
    %395 = arith.mulf %390, %394 : vector<16x32xf32>
    %c10_i32 = arith.constant 10 : i32
    %396 = arith.addi %13, %c10_i32 : i32
    %397 = vector.broadcast %396 : i32 to vector<16x1xi32>
    %398 = arith.cmpi eq, %11, %397 : vector<16x1xi32>
    %399 = vector.shape_cast %398 : vector<16x1xi1> to vector<16x1xi1>
    %400 = vector.broadcast %399 : vector<16x1xi1> to vector<16x32xi1>
    %401 = arith.select %400, %395, %366 : vector<16x32xi1>, vector<16x32xf32>
    %c176 = arith.constant 176 : index
    %c0_77 = arith.constant 0 : index
    %402 = vector.load %arg10[%c176, %c0_77] : memref<192x128xf32, #tpu.memory_space<vmem>>, vector<16x128xf32>
    %403 = arith.truncf %395 : vector<16x32xf32> to vector<16x32xbf16>
    %cst_78 = arith.constant dense<0.000000e+00> : vector<16x128xf32>
    %404 = tpu.matmul %403, %12, %cst_78 {dimension_numbers = #tpu.dot_dimension_numbers<[1], [0], [0], [1], [0, 0, 1, 1], [], []>} : vector<16x32xbf16>, vector<32x128xbf16>, vector<16x128xf32> -> vector<16x128xf32>
    %405 = arith.addf %402, %404 : vector<16x128xf32>
    %406 = vector.extract_strided_slice %405 {offsets = [0, 0], sizes = [16, 32], strides = [1, 1]} : vector<16x128xf32> to vector<16x32xf32>
    %407 = arith.negf %406 : vector<16x32xf32>
    %408 = math.exp %407 : vector<16x32xf32>
    %cst_79 = arith.constant 1.000000e+00 : f32
    %409 = vector.broadcast %cst_79 : f32 to vector<16x32xf32>
    %410 = arith.addf %409, %408 : vector<16x32xf32>
    %411 = arith.divf %409, %410 : vector<16x32xf32>
    %412 = vector.extract_strided_slice %405 {offsets = [0, 32], sizes = [16, 32], strides = [1, 1]} : vector<16x128xf32> to vector<16x32xf32>
    %413 = arith.negf %412 : vector<16x32xf32>
    %414 = math.exp %413 : vector<16x32xf32>
    %cst_80 = arith.constant 1.000000e+00 : f32
    %415 = vector.broadcast %cst_80 : f32 to vector<16x32xf32>
    %416 = arith.addf %415, %414 : vector<16x32xf32>
    %417 = arith.divf %415, %416 : vector<16x32xf32>
    %418 = vector.extract_strided_slice %405 {offsets = [0, 64], sizes = [16, 32], strides = [1, 1]} : vector<16x128xf32> to vector<16x32xf32>
    %419 = math.tanh %418 : vector<16x32xf32>
    %420 = vector.extract_strided_slice %405 {offsets = [0, 96], sizes = [16, 32], strides = [1, 1]} : vector<16x128xf32> to vector<16x32xf32>
    %421 = arith.negf %420 : vector<16x32xf32>
    %422 = math.exp %421 : vector<16x32xf32>
    %cst_81 = arith.constant 1.000000e+00 : f32
    %423 = vector.broadcast %cst_81 : f32 to vector<16x32xf32>
    %424 = arith.addf %423, %422 : vector<16x32xf32>
    %425 = arith.divf %423, %424 : vector<16x32xf32>
    %426 = arith.mulf %417, %393 : vector<16x32xf32>
    %427 = arith.mulf %411, %419 : vector<16x32xf32>
    %428 = arith.addf %426, %427 : vector<16x32xf32>
    %429 = math.tanh %428 : vector<16x32xf32>
    %430 = arith.mulf %425, %429 : vector<16x32xf32>
    %c11_i32 = arith.constant 11 : i32
    %431 = arith.addi %13, %c11_i32 : i32
    %432 = vector.broadcast %431 : i32 to vector<16x1xi32>
    %433 = arith.cmpi eq, %11, %432 : vector<16x1xi32>
    %434 = vector.shape_cast %433 : vector<16x1xi1> to vector<16x1xi1>
    %435 = vector.broadcast %434 : vector<16x1xi1> to vector<16x32xi1>
    %436 = arith.select %435, %430, %401 : vector<16x32xi1>, vector<16x32xf32>
    %c0_82 = arith.constant 0 : index
    %c0_83 = arith.constant 0 : index
    %437 = vector.load %arg11[%c0_82, %c0_83] : memref<16x32xf32, #tpu.memory_space<vmem>>, vector<16x32xf32>
    tpu.vector_store %arg11[%c0_82, %c0_83], %430 {strides = array<i32>} : memref<16x32xf32, #tpu.memory_space<vmem>>, vector<16x32xf32>,
    %c0_84 = arith.constant 0 : index
    %c0_85 = arith.constant 0 : index
    %438 = vector.load %arg12[%c0_84, %c0_85] : memref<16x32xf32, #tpu.memory_space<vmem>>, vector<16x32xf32>
    tpu.vector_store %arg12[%c0_84, %c0_85], %428 {strides = array<i32>} : memref<16x32xf32, #tpu.memory_space<vmem>>, vector<16x32xf32>,
    %c0_86 = arith.constant 0 : index
    %c0_87 = arith.constant 0 : index
    %439 = vector.load %arg13[%c0_86, %c0_87] : memref<16x32xf32, #tpu.memory_space<vmem>>, vector<16x32xf32>
    tpu.vector_store %arg13[%c0_86, %c0_87], %436 {strides = array<i32>} : memref<16x32xf32, #tpu.memory_space<vmem>>, vector<16x32xf32>,
    %c0_i32_88 = arith.constant 0 : i32
    %440 = arith.cmpi eq, %arg1, %c0_i32_88 : i32
    %441 = arith.extui %440 : i1 to i32
    %c0_i32_89 = arith.constant 0 : i32
    %442 = arith.cmpi ne, %441, %c0_i32_89 : i32
    scf.if %442 {
      %443 = arith.truncf %436 : vector<16x32xf32> to vector<16x32xbf16>
      %c0_90 = arith.constant 0 : index
      %c0_91 = arith.constant 0 : index
      %444 = vector.load %arg7[%c0_90, %c0_91] : memref<32x128xbf16, #tpu.memory_space<vmem>>, vector<32x128xbf16>
      %cst_92 = arith.constant dense<0.000000e+00> : vector<16x128xf32>
      %445 = tpu.matmul %443, %444, %cst_92 {dimension_numbers = #tpu.dot_dimension_numbers<[1], [0], [0], [1], [0, 0, 1, 1], [], []>} : vector<16x32xbf16>, vector<32x128xbf16>, vector<16x128xf32> -> vector<16x128xf32>
      %c0_93 = arith.constant 0 : index
      %c0_94 = arith.constant 0 : index
      %446 = vector.load %arg8[%c0_93, %c0_94] : memref<1x128xf32, #tpu.memory_space<vmem>>, vector<1x128xf32>
      %447 = vector.broadcast %446 : vector<1x128xf32> to vector<16x128xf32>
      %448 = arith.addf %445, %447 : vector<16x128xf32>
      %c0_95 = arith.constant 0 : index
      %c0_96 = arith.constant 0 : index
      %449 = vector.load %arg9[%c0_95, %c0_96] : memref<16x128xf32, #tpu.memory_space<vmem>>, vector<16x128xf32>
      tpu.vector_store %arg9[%c0_95, %c0_96], %448 {strides = array<i32>} : memref<16x128xf32, #tpu.memory_space<vmem>>, vector<16x128xf32>,
    } else {
    }
    return
  }
  func.func @transform_0(%arg0: i32, %arg1: i32) -> (i32, i32) {
    %c0_i32 = arith.constant 0 : i32
    %c0_i32_0 = arith.constant 0 : i32
    return %arg0, %c0_i32 : i32, i32
  }
  func.func @transform_1(%arg0: i32, %arg1: i32) -> (i32, i32, i32, i32) {
    %c0_i32 = arith.constant 0 : i32
    %c0_i32_0 = arith.constant 0 : i32
    %c0_i32_1 = arith.constant 0 : i32
    return %arg1, %arg0, %c0_i32, %c0_i32_0 : i32, i32, i32, i32
  }
  func.func @transform_2(%arg0: i32, %arg1: i32) -> (i32, i32) {
    %c0_i32 = arith.constant 0 : i32
    %c0_i32_0 = arith.constant 0 : i32
    %c0_i32_1 = arith.constant 0 : i32
    return %c0_i32, %c0_i32_0 : i32, i32
  }
  func.func @transform_3(%arg0: i32, %arg1: i32) -> (i32, i32) {
    %c0_i32 = arith.constant 0 : i32
    %c0_i32_0 = arith.constant 0 : i32
    %c0_i32_1 = arith.constant 0 : i32
    return %c0_i32, %c0_i32_0 : i32, i32
  }
  func.func @transform_4(%arg0: i32, %arg1: i32) -> (i32, i32) {
    %c0_i32 = arith.constant 0 : i32
    %c0_i32_0 = arith.constant 0 : i32
    %c0_i32_1 = arith.constant 0 : i32
    return %c0_i32, %c0_i32_0 : i32, i32
  }
  func.func @transform_5(%arg0: i32, %arg1: i32) -> (i32, i32) {
    %c0_i32 = arith.constant 0 : i32
    %c0_i32_0 = arith.constant 0 : i32
    %c0_i32_1 = arith.constant 0 : i32
    return %c0_i32, %c0_i32_0 : i32, i32
  }
  func.func @transform_6(%arg0: i32, %arg1: i32) -> (i32, i32) {
    %c0_i32 = arith.constant 0 : i32
    %c0_i32_0 = arith.constant 0 : i32
    %c0_i32_1 = arith.constant 0 : i32
    return %c0_i32, %c0_i32_0 : i32, i32
  }
  func.func @transform_7(%arg0: i32, %arg1: i32) -> (i32, i32) {
    %c0_i32 = arith.constant 0 : i32
    %c0_i32_0 = arith.constant 0 : i32
    return %arg0, %c0_i32 : i32, i32
  }
}

</mosaic_0001>

<llo_original>
// kernel: tpu_custom_call.1
$region0: #{tpu_custom_call.1}
  #allocation0 [shape = 'u32[]', space=smem, size = 0x4, offset = 0x4, fixed_abs, tag = 'smem constant byte address 0x4 - core index']
  #allocation1 [shape = 'u32[144,128]{1,0:T(1,128)}', space=vmem, size = 0x12000, scoped, tag = 'internal scratch']
  #allocation2 [shape = 'f32[192,128]{1,0:T(8,128)}', space=vmem, size = 0x18000, scoped, tag = 'scratch operand']
  #allocation3 [shape = 'f32[16,32]{1,0:T(8,128)}', space=vmem, size = 0x2000, scoped, tag = 'scratch operand']
  #allocation4 [shape = 'f32[16,32]{1,0:T(8,128)}', space=vmem, size = 0x2000, scoped, tag = 'scratch operand']
  #allocation5 [shape = 'f32[16,32]{1,0:T(8,128)}', space=vmem, size = 0x2000, scoped, tag = 'scratch operand']
  %s0 = inlined_call_operand.vmem [shape: s32[16,1], index: 0, kind: input, shape index: {}]
  %s1 = inlined_call_operand.vmem [shape: bf16[1,1,192,16], index: 1, kind: input, shape index: {}]
  %s2 = inlined_call_operand.vmem [shape: bf16[16,128], index: 2, kind: input, shape index: {}]
  %s3 = inlined_call_operand.vmem [shape: bf16[32,128], index: 3, kind: input, shape index: {}]
  %s4 = inlined_call_operand.vmem [shape: f32[1,128], index: 4, kind: input, shape index: {}]
  %s5 = inlined_call_operand.vmem [shape: bf16[32,128], index: 5, kind: input, shape index: {}]
  %s6 = inlined_call_operand.vmem [shape: f32[1,128], index: 6, kind: input, shape index: {}]
  %s7 = inlined_call_operand.hbm [shape: f32[16,128], index: 7, kind: output, shape index: {}]
  %s8 = sld [smem:[#allocation0]]
  $region46: #{tpu_custom_call.1} parent=0
    _
  %s10 = ssub.s32 1, %s8
  %s11 = scalar_select 0, %s10, %s8
  $region1: #{tpu_custom_call.1} parent=0
    #allocation6 [shape = 'u8[8192]{0}', space=vmem, size = 0x2000, scoped, tag = 'output window, operand 0, single buffered']
    #allocation7 [shape = 's32[1]{0}', space=sflag, size = 0x4, scoped, tag = 'scoped memory for tpu_custom_call.1']
    %12 = vsyncpa [#allocation7], 0
    // Predicated region
    $region2: #{tpu_custom_call.1} parent=1 // pred_check
      _
    $region3: #{tpu_custom_call.1} parent=1 // pred_check_branch
      %14 = sbr.rel (0) target = $region5
    $region4: #{tpu_custom_call.1} parent=1 // pred_region
      _
    $region5: #{tpu_custom_call.1} parent=1 // pred_fallthru
      _
    // Predicated region
    $region6: #{tpu_custom_call.1} parent=1 // pred_check
      _
    $region7: #{tpu_custom_call.1} parent=1 // pred_check_branch
      %16 = sbr.rel (0) target = $region9
    $region8: #{tpu_custom_call.1} parent=1 // pred_region
      _
    $region9: #{tpu_custom_call.1} parent=1 // pred_fallthru
      _
    // Predicated region
    $region10: #{tpu_custom_call.1} parent=1 // pred_check
      _
    $region11: #{tpu_custom_call.1} parent=1 // pred_check_branch
      %18 = sbr.rel (0) target = $region13
    $region12: #{tpu_custom_call.1} parent=1 // pred_region
      _
    $region13: #{tpu_custom_call.1} parent=1 // pred_fallthru
      _
    // Predicated region
    $region14: #{tpu_custom_call.1} parent=1 // pred_check
      _
    $region15: #{tpu_custom_call.1} parent=1 // pred_check_branch
      %20 = sbr.rel (0) target = $region17
    $region16: #{tpu_custom_call.1} parent=1 // pred_region
      _
    $region17: #{tpu_custom_call.1} parent=1 // pred_fallthru
      _
    // Predicated region
    $region18: #{tpu_custom_call.1} parent=1 // pred_check
      _
    $region19: #{tpu_custom_call.1} parent=1 // pred_check_branch
      %22 = sbr.rel (0) target = $region21
    $region20: #{tpu_custom_call.1} parent=1 // pred_region
      _
    $region21: #{tpu_custom_call.1} parent=1 // pred_fallthru
      _
    // Predicated region
    $region22: #{tpu_custom_call.1} parent=1 // pred_check
      _
    $region23: #{tpu_custom_call.1} parent=1 // pred_check_branch
      %24 = sbr.rel (0) target = $region25
    $region24: #{tpu_custom_call.1} parent=1 // pred_region
      _
    $region25: #{tpu_custom_call.1} parent=1 // pred_fallthru
      _
    // Predicated region
    $region26: #{tpu_custom_call.1} parent=1 // pred_check
      _
    $region27: #{tpu_custom_call.1} parent=1 // pred_check_branch
      %26 = sbr.rel (0) target = $region29
    $region28: #{tpu_custom_call.1} parent=1 // pred_region
      _
    $region29: #{tpu_custom_call.1} parent=1 // pred_fallthru
      _
    %p28 = scmp.eq.s32.totalorder 0, 0
    // Predicated region
    $region30: #{tpu_custom_call.1} parent=1 // pred_check
      %p29 = pneg %p28
    $region31: #{tpu_custom_call.1} parent=1 // pred_check_branch
      %31 = sbr.rel (%p29) target = $region33
    $region32: #{tpu_custom_call.1} parent=1 // pred_region
      %vm32 = vcmask 261120
      %33 = vst.msk [vmem:[#allocation3] sm:$0xff] %vm32, 0.0
      %34 = vst.msk [vmem:[#allocation3 + $0x8] sm:$0xff] %vm32, 0.0
      %35 = vst.msk [vmem:[#allocation4] sm:$0xff] %vm32, 0.0
      %36 = vst.msk [vmem:[#allocation4 + $0x8] sm:$0xff] %vm32, 0.0
      %37 = vst.msk [vmem:[#allocation5] sm:$0xff] %vm32, 0.0
      %38 = vst.msk [vmem:[#allocation5 + $0x8] sm:$0xff] %vm32, 0.0
    $region33: #{tpu_custom_call.1} parent=1 // pred_fallthru
      _
    %v39 = vld [vmem:[%s1] sm:$0xf]
    %v40 = vld [vmem:[%s1 + $0x4] sm:$0xf]
    %v41 = vld [vmem:[%s1 + $0x8] sm:$0xf]
    %v42 = vld [vmem:[%s1 + $0xc] sm:$0xf]
    %v43 = vld [vmem:[%s1 + $0x10] sm:$0xf]
    %v44 = vld [vmem:[%s1 + $0x14] sm:$0xf]
    %v45 = vld [vmem:[%s1 + $0x18] sm:$0xf]
    %v46 = vld [vmem:[%s1 + $0x1c] sm:$0xf]
    %v47 = vld [vmem:[%s1 + $0x20] sm:$0xf]
    %v48 = vld [vmem:[%s1 + $0x24] sm:$0xf]
    %v49 = vld [vmem:[%s1 + $0x28] sm:$0xf]
    %v50 = vld [vmem:[%s1 + $0x2c] sm:$0xf]
    %v51 = vld [vmem:[%s1 + $0x30] sm:$0xf]
    %v52 = vld [vmem:[%s1 + $0x34] sm:$0xf]
    %v53 = vld [vmem:[%s1 + $0x38] sm:$0xf]
    %v54 = vld [vmem:[%s1 + $0x3c] sm:$0xf]
    %v55 = vld [vmem:[%s1 + $0x40] sm:$0xf]
    %v56 = vld [vmem:[%s1 + $0x44] sm:$0xf]
    %v57 = vld [vmem:[%s1 + $0x48] sm:$0xf]
    %v58 = vld [vmem:[%s1 + $0x4c] sm:$0xf]
    %v59 = vld [vmem:[%s1 + $0x50] sm:$0xf]
    %v60 = vld [vmem:[%s1 + $0x54] sm:$0xf]
    %v61 = vld [vmem:[%s1 + $0x58] sm:$0xf]
    %v62 = vld [vmem:[%s1 + $0x5c] sm:$0xf]
    %v63 = vld [vmem:[%s2] sm:$0xf]
    %v64 = vld [vmem:[%s2 + $0x4] sm:$0xf]
    %v65 = vld [vmem:[%s4] sm:$0x1]
    %v67 = vlaneseq
    %v68 = vshrl.u32 %v67, 7
    %v69 = vsub.s32 0, %v68
    %v70 = vrot.slane %v65, %v69
    %v96 = vunpack.c.l.b16 %v39
    %v97 = vunpack.c.l.b16 %v40
    %v98 = vunpack.c.l.b16 %v41
    %v99 = vunpack.c.l.b16 %v42
    %v100 = vunpack.c.l.b16 %v43
    %v101 = vunpack.c.l.b16 %v44
    %v102 = vunpack.c.l.b16 %v45
    %v103 = vunpack.c.l.b16 %v46
    %v104 = vunpack.c.l.b16 %v47
    %v105 = vunpack.c.l.b16 %v48
    %v106 = vunpack.c.l.b16 %v49
    %v107 = vunpack.c.l.b16 %v50
    %v108 = vunpack.c.l.b16 %v51
    %v109 = vunpack.c.l.b16 %v52
    %v110 = vunpack.c.l.b16 %v53
    %v111 = vunpack.c.l.b16 %v54
    %v112 = vunpack.c.l.b16 %v55
    %v113 = vunpack.c.l.b16 %v56
    %v114 = vunpack.c.l.b16 %v57
    %v115 = vunpack.c.l.b16 %v58
    %v116 = vunpack.c.l.b16 %v59
    %v117 = vunpack.c.l.b16 %v60
    %v118 = vunpack.c.l.b16 %v61
    %v119 = vunpack.c.l.b16 %v62
    %v120 = vpack.c.b16 %v97, %v96
    %v121 = vpack.c.b16 %v99, %v98
    %v122 = vpack.c.b16 %v101, %v100
    %v123 = vpack.c.b16 %v103, %v102
    %v124 = vpack.c.b16 %v105, %v104
    %v125 = vpack.c.b16 %v107, %v106
    %v126 = vpack.c.b16 %v109, %v108
    %v127 = vpack.c.b16 %v111, %v110
    %v128 = vpack.c.b16 %v113, %v112
    %v129 = vpack.c.b16 %v115, %v114
    %v130 = vpack.c.b16 %v117, %v116
    %v131 = vpack.c.b16 %v119, %v118
    %v134 = vunpack.c.l.b16 %v63
    %v135 = vunpack.c.l.b16 %v64
    %v136 = vpack.c.b16 %v135, %v134
    %vm138 = vcmask 130048
    %v140 = vsel %vm138, %v120, 0
    %v143 = vsel %vm138, %v121, 0
    %v146 = vsel %vm138, %v122, 0
    %v149 = vsel %vm138, %v123, 0
    %v152 = vsel %vm138, %v124, 0
    %v155 = vsel %vm138, %v125, 0
    %v158 = vsel %vm138, %v126, 0
    %v161 = vsel %vm138, %v127, 0
    %v164 = vsel %vm138, %v128, 0
    %v167 = vsel %vm138, %v129, 0
    %v170 = vsel %vm138, %v130, 0
    %v173 = vsel %vm138, %v131, 0
    %175 = vmatprep.subr.bf16.mxu0 0
    %176 = vmatpush1.bf16.msra.mxu0 0
    %177 = vmatprep.subr.bf16.mxu0 0
    %178 = vmatpush1.bf16.msra.mxu0 0
    %179 = vmatprep.subr.bf16.mxu0 0
    %180 = vmatpush1.bf16.msra.mxu0 0
    %181 = vmatprep.subr.bf16.mxu0 0
    %182 = vmatpush1.bf16.msra.mxu0 0
    %183 = vmatprep.subr.bf16.mxu0 0
    %184 = vmatpush1.bf16.msra.mxu0 0
    %185 = vmatprep.subr.bf16.mxu0 0
    %186 = vmatpush1.bf16.msra.mxu0 0
    %187 = vmatprep.subr.bf16.mxu0 0
    %188 = vmatpush1.bf16.msra.mxu0 0
    %189 = vmatprep.subr.bf16.mxu0 0
    %190 = vmatpush1.bf16.msra.mxu0 %v136
    %191 = vmatprep.subr.bf16.mxu0 0
    %192 = vmatpush2.bf16.msra.mxu0 0
    %193 = vmatprep.subr.bf16.mxu0 0
    %194 = vmatpush2.bf16.msra.mxu0 0
    %195 = vmatprep.subr.bf16.mxu0 0
    %196 = vmatpush2.bf16.msra.mxu0 0
    %197 = vmatprep.subr.bf16.mxu0 0
    %198 = vmatpush2.bf16.msra.mxu0 0
    %199 = vmatprep.subr.bf16.mxu0 0
    %200 = vmatpush2.bf16.msra.mxu0 0
    %201 = vmatprep.subr.bf16.mxu0 0
    %202 = vmatpush2.bf16.msra.mxu0 0
    %203 = vmatprep.subr.bf16.mxu0 0
    %204 = vmatpush2.bf16.msra.mxu0 0
    %205 = vmatprep.subr.bf16.mxu0 0
    %206 = vmatpush2.bf16.msra.mxu0 0
    %207 = vmatprep.mubr.bf16.mxu0 0
    %208 = vmatmul.mubr.bf16.gmra.mxu0 %v140
    %v209 = vpop.f32.mrf.mxu0
    %v210 = vadd.f32 %v70, %v209
    %v211 = vpop.f32.mrf.mxu0
    %v212 = vpop.f32.mrf.mxu0
    %v213 = vadd.f32 %v70, %v212
    %v214 = vpop.f32.mrf.mxu0
    %215 = vmatprep.mubr.bf16.mxu0 0
    %216 = vmatmul.mubr.bf16.gmra.mxu0 %v143
    %v217 = vpop.f32.mrf.mxu0
    %v218 = vadd.f32 %v70, %v217
    %v219 = vpop.f32.mrf.mxu0
    %v220 = vpop.f32.mrf.mxu0
    %v221 = vadd.f32 %v70, %v220
    %v222 = vpop.f32.mrf.mxu0
    %223 = vmatprep.mubr.bf16.mxu0 0
    %224 = vmatmul.mubr.bf16.gmra.mxu0 %v146
    %v225 = vpop.f32.mrf.mxu0
    %v226 = vadd.f32 %v70, %v225
    %v227 = vpop.f32.mrf.mxu0
    %v228 = vpop.f32.mrf.mxu0
    %v229 = vadd.f32 %v70, %v228
    %v230 = vpop.f32.mrf.mxu0
    %231 = vmatprep.mubr.bf16.mxu0 0
    %232 = vmatmul.mubr.bf16.gmra.mxu0 %v149
    %v233 = vpop.f32.mrf.mxu0
    %v234 = vadd.f32 %v70, %v233
    %v235 = vpop.f32.mrf.mxu0
    %v236 = vpop.f32.mrf.mxu0
    %v237 = vadd.f32 %v70, %v236
    %v238 = vpop.f32.mrf.mxu0
    %239 = vmatprep.mubr.bf16.mxu0 0
    %240 = vmatmul.mubr.bf16.gmra.mxu0 %v152
    %v241 = vpop.f32.mrf.mxu0
    %v242 = vadd.f32 %v70, %v241
    %v243 = vpop.f32.mrf.mxu0
    %v244 = vpop.f32.mrf.mxu0
    %v245 = vadd.f32 %v70, %v244
    %v246 = vpop.f32.mrf.mxu0
    %247 = vmatprep.mubr.bf16.mxu0 0
    %248 = vmatmul.mubr.bf16.gmra.mxu0 %v155
    %v249 = vpop.f32.mrf.mxu0
    %v250 = vadd.f32 %v70, %v249
    %v251 = vpop.f32.mrf.mxu0
    %v252 = vpop.f32.mrf.mxu0
    %v253 = vadd.f32 %v70, %v252
    %v254 = vpop.f32.mrf.mxu0
    %255 = vmatprep.mubr.bf16.mxu0 0
    %256 = vmatmul.mubr.bf16.gmra.mxu0 %v158
    %v257 = vpop.f32.mrf.mxu0
    %v258 = vadd.f32 %v70, %v257
    %v259 = vpop.f32.mrf.mxu0
    %v260 = vpop.f32.mrf.mxu0
    %v261 = vadd.f32 %v70, %v260
    %v262 = vpop.f32.mrf.mxu0
    %263 = vmatprep.mubr.bf16.mxu0 0
    %264 = vmatmul.mubr.bf16.gmra.mxu0 %v161
    %v265 = vpop.f32.mrf.mxu0
    %v266 = vadd.f32 %v70, %v265
    %v267 = vpop.f32.mrf.mxu0
    %v268 = vpop.f32.mrf.mxu0
    %v269 = vadd.f32 %v70, %v268
    %v270 = vpop.f32.mrf.mxu0
    %271 = vmatprep.mubr.bf16.mxu0 0
    %272 = vmatmul.mubr.bf16.gmra.mxu0 %v164
    %v273 = vpop.f32.mrf.mxu0
    %v274 = vadd.f32 %v70, %v273
    %v275 = vpop.f32.mrf.mxu0
    %v276 = vpop.f32.mrf.mxu0
    %v277 = vadd.f32 %v70, %v276
    %v278 = vpop.f32.mrf.mxu0
    %279 = vmatprep.mubr.bf16.mxu0 0
    %280 = vmatmul.mubr.bf16.gmra.mxu0 %v167
    %v281 = vpop.f32.mrf.mxu0
    %v282 = vadd.f32 %v70, %v281
    %v283 = vpop.f32.mrf.mxu0
    %v284 = vpop.f32.mrf.mxu0
    %v285 = vadd.f32 %v70, %v284
    %v286 = vpop.f32.mrf.mxu0
    %287 = vmatprep.mubr.bf16.mxu0 0
    %288 = vmatmul.mubr.bf16.gmra.mxu0 %v170
    %v289 = vpop.f32.mrf.mxu0
    %v290 = vadd.f32 %v70, %v289
    %v291 = vpop.f32.mrf.mxu0
    %v292 = vpop.f32.mrf.mxu0
    %v293 = vadd.f32 %v70, %v292
    %v294 = vpop.f32.mrf.mxu0
    %295 = vmatprep.mubr.bf16.mxu0 0
    %296 = vmatmul.mubr.bf16.gmra.mxu0 %v173
    %v297 = vpop.f32.mrf.mxu0
    %v298 = vadd.f32 %v70, %v297
    %v299 = vpop.f32.mrf.mxu0
    %v300 = vpop.f32.mrf.mxu0
    %v301 = vadd.f32 %v70, %v300
    %v302 = vpop.f32.mrf.mxu0
    %303 = vdwg.mxu0
    %304 = vst [vmem:[#allocation2] sm:$0xff] %v210
    %305 = vst [vmem:[#allocation2 + $0x8] sm:$0xff] %v213
    %306 = vst [vmem:[#allocation2 + $0x10] sm:$0xff] %v218
    %307 = vst [vmem:[#allocation2 + $0x18] sm:$0xff] %v221
    %308 = vst [vmem:[#allocation2 + $0x20] sm:$0xff] %v226
    %309 = vst [vmem:[#allocation2 + $0x28] sm:$0xff] %v229
    %310 = vst [vmem:[#allocation2 + $0x30] sm:$0xff] %v234
    %311 = vst [vmem:[#allocation2 + $0x38] sm:$0xff] %v237
    %312 = vst [vmem:[#allocation2 + $0x40] sm:$0xff] %v242
    %313 = vst [vmem:[#allocation2 + $0x48] sm:$0xff] %v245
    %314 = vst [vmem:[#allocation2 + $0x50] sm:$0xff] %v250
    %315 = vst [vmem:[#allocation2 + $0x58] sm:$0xff] %v253
    %316 = vst [vmem:[#allocation2 + $0x60] sm:$0xff] %v258
    %317 = vst [vmem:[#allocation2 + $0x68] sm:$0xff] %v261
    %318 = vst [vmem:[#allocation2 + $0x70] sm:$0xff] %v266
    %319 = vst [vmem:[#allocation2 + $0x78] sm:$0xff] %v269
    %320 = vst [vmem:[#allocation2 + $0x80] sm:$0xff] %v274
    %321 = vst [vmem:[#allocation2 + $0x88] sm:$0xff] %v277
    %322 = vst [vmem:[#allocation2 + $0x90] sm:$0xff] %v282
    %323 = vst [vmem:[#allocation2 + $0x98] sm:$0xff] %v285
    %324 = vst [vmem:[#allocation2 + $0xa0] sm:$0xff] %v290
    %325 = vst [vmem:[#allocation2 + $0xa8] sm:$0xff] %v293
    %326 = vst [vmem:[#allocation2 + $0xb0] sm:$0xff] %v298
    %327 = vst [vmem:[#allocation2 + $0xb8] sm:$0xff] %v301
    %v328 = vld [vmem:[%s0] sm:$0xff]
    %v329 = vld [vmem:[%s0 + $0x8] sm:$0xff]
    %v330 = vld [vmem:[%s3] sm:$0xf]
    %v331 = vld [vmem:[%s3 + $0x4] sm:$0xf]
    %v332 = vld [vmem:[%s3 + $0x8] sm:$0xf]
    %v333 = vld [vmem:[%s3 + $0xc] sm:$0xf]
    %s334 = smul.u32 0, 12
    %v335 = vld [vmem:[#allocation3] sm:$0xff]
    %v336 = vld [vmem:[#allocation3 + $0x8] sm:$0xff]
    %v337 = vld [vmem:[#allocation4] sm:$0xff]
    %v338 = vld [vmem:[#allocation4 + $0x8] sm:$0xff]
    %v339 = vld [vmem:[#allocation5] sm:$0xff]
    %v340 = vld [vmem:[#allocation5 + $0x8] sm:$0xff]
    %v341 = vld [vmem:[#allocation2] sm:$0xff]
    %v342 = vld [vmem:[#allocation2 + $0x8] sm:$0xff]
    %v343 = vpack.c.bf16 %v336, %v335
    %v348 = vunpack.c.l.b16 %v330
    %v349 = vunpack.c.l.b16 %v331
    %v350 = vunpack.c.l.b16 %v332
    %v351 = vunpack.c.l.b16 %v333
    %v352 = vpack.c.b16 %v349, %v348
    %v353 = vpack.c.b16 %v351, %v350
    %vm356 = vcmask 261120
    %v358 = vsel %vm356, %v343, 0
    %360 = vmatprep.subr.bf16.mxu0 0
    %361 = vmatpush1.bf16.msra.mxu0 0
    %362 = vmatprep.subr.bf16.mxu0 0
    %363 = vmatpush1.bf16.msra.mxu0 0
    %364 = vmatprep.subr.bf16.mxu0 0
    %365 = vmatpush1.bf16.msra.mxu0 0
    %366 = vmatprep.subr.bf16.mxu0 0
    %367 = vmatpush1.bf16.msra.mxu0 0
    %368 = vmatprep.subr.bf16.mxu0 0
    %369 = vmatpush1.bf16.msra.mxu0 0
    %370 = vmatprep.subr.bf16.mxu0 0
    %371 = vmatpush1.bf16.msra.mxu0 0
    %372 = vmatprep.subr.bf16.mxu0 0
    %373 = vmatpush1.bf16.msra.mxu0 %v353
    %374 = vmatprep.subr.bf16.mxu0 0
    %375 = vmatpush1.bf16.msra.mxu0 %v352
    %376 = vmatprep.subr.bf16.mxu0 0
    %377 = vmatpush2.bf16.msra.mxu0 0
    %378 = vmatprep.subr.bf16.mxu0 0
    %379 = vmatpush2.bf16.msra.mxu0 0
    %380 = vmatprep.subr.bf16.mxu0 0
    %381 = vmatpush2.bf16.msra.mxu0 0
    %382 = vmatprep.subr.bf16.mxu0 0
    %383 = vmatpush2.bf16.msra.mxu0 0
    %384 = vmatprep.subr.bf16.mxu0 0
    %385 = vmatpush2.bf16.msra.mxu0 0
    %386 = vmatprep.subr.bf16.mxu0 0
    %387 = vmatpush2.bf16.msra.mxu0 0
    %388 = vmatprep.subr.bf16.mxu0 0
    %389 = vmatpush2.bf16.msra.mxu0 0
    %390 = vmatprep.subr.bf16.mxu0 0
    %391 = vmatpush2.bf16.msra.mxu0 0
    %392 = vmatprep.mubr.bf16.mxu0 0
    %393 = vmatmul.mubr.bf16.gmra.mxu0 %v358
    %v394 = vpop.f32.mrf.mxu0
    %v395 = vadd.f32 0.0, %v394
    %v396 = vpop.f32.mrf.mxu0
    %v397 = vpop.f32.mrf.mxu0
    %v398 = vadd.f32 0.0, %v397
    %v399 = vpop.f32.mrf.mxu0
    %400 = vdwg.mxu0
    %v401 = vadd.f32 %v341, %v395
    %v402 = vadd.f32 %v342, %v398
    %v403 = vxor.u32 %v401, 2147483648
    %v404 = vxor.u32 %v402, 2147483648
    %v405 = vmul.f32 %v403, 1.442695
    %v406 = vpow.pop %v405
    %v407 = vmul.f32 %v404, 1.442695
    %v408 = vpow.pop %v407
    %v409 = vadd.f32 %v406, 1.0
    %v410 = vadd.f32 %v408, 1.0
    %v411 = vrcp.pop %v409
    %v412 = vmul.f32 1.0, %v411
    %v413 = vrcp.pop %v410
    %v414 = vmul.f32 1.0, %v413
    %v415 = vtanh.pop %v401
    %v416 = vtanh.pop %v402
    %419 = vrot.lane.b32.xlu0 %v337, 32
    %v420 = vpop.permute.xlu0 %419
    %421 = vrot.lane.b32.xlu0 %v338, 32
    %v422 = vpop.permute.xlu0 %421
    %v425 = vmul.f32 %v412, %v420
    %v426 = vmul.f32 %v414, %v422
    %429 = vrot.lane.b32.xlu0 %v415, 64
    %v430 = vpop.permute.xlu0 %429
    %431 = vrot.lane.b32.xlu0 %v416, 64
    %v432 = vpop.permute.xlu0 %431
    %v435 = vmul.f32 %v412, %v430
    %v436 = vmul.f32 %v414, %v432
    %439 = vrot.lane.b32.xlu0 %v435, 32
    %v440 = vpop.permute.xlu0 %439
    %441 = vrot.lane.b32.xlu0 %v436, 32
    %v442 = vpop.permute.xlu0 %441
    %v445 = vadd.f32 %v425, %v440
    %v446 = vadd.f32 %v426, %v442
    %v447 = vtanh.pop %v445
    %v448 = vtanh.pop %v446
    %451 = vrot.lane.b32.xlu0 %v447, 64
    %v452 = vpop.permute.xlu0 %451
    %453 = vrot.lane.b32.xlu0 %v448, 64
    %v454 = vpop.permute.xlu0 %453
    %v457 = vmul.f32 %v412, %v452
    %v458 = vmul.f32 %v414, %v454
    %v459 = vstv %s334
    %vm460 = vcmp.eq.s32.totalorder %v328, %v459
    %vm461 = vcmp.eq.s32.totalorder %v329, %v459
    %v462 = vsel %vm460, 1, 0
    %v463 = vsel %vm461, 1, 0
    %464 = vset.pattern.permute.xlu0 0
    %465 = vperm.xlu0 %464, %v462
    %v466 = vpop.permute.xlu0 %465
    %467 = vset.pattern.permute.xlu0 0
    %468 = vperm.xlu0 %467, %v463
    %v469 = vpop.permute.xlu0 %468
    %vm470 = vcmp.eq.s32.totalorder %v466, 1
    %vm471 = vcmp.eq.s32.totalorder %v469, 1
    %474 = vrot.lane.b32.xlu0 %v339, 96
    %v475 = vpop.permute.xlu0 %474
    %476 = vrot.lane.b32.xlu0 %v340, 96
    %v477 = vpop.permute.xlu0 %476
    %v480 = vsel %vm470, %v457, %v475
    %v481 = vsel %vm471, %v458, %v477
    %v482 = vld [vmem:[#allocation2 + $0x10] sm:$0xff]
    %v483 = vld [vmem:[#allocation2 + $0x18] sm:$0xff]
    %v484 = vpack.c.bf16 %v458, %v457
    %486 = vrot.lane.b32.xlu0 %v484, 32
    %v487 = vpop.permute.xlu0 %486
    %v489 = vsel %vm356, %v487, 0
    %491 = vmatprep.subr.bf16.mxu0 0
    %492 = vmatpush1.bf16.msra.mxu0 0
    %493 = vmatprep.subr.bf16.mxu0 0
    %494 = vmatpush1.bf16.msra.mxu0 0
    %495 = vmatprep.subr.bf16.mxu0 0
    %496 = vmatpush1.bf16.msra.mxu0 0
    %497 = vmatprep.subr.bf16.mxu0 0
    %498 = vmatpush1.bf16.msra.mxu0 0
    %499 = vmatprep.subr.bf16.mxu0 0
    %500 = vmatpush1.bf16.msra.mxu0 0
    %501 = vmatprep.subr.bf16.mxu0 0
    %502 = vmatpush1.bf16.msra.mxu0 0
    %503 = vmatprep.subr.bf16.mxu0 0
    %504 = vmatpush1.bf16.msra.mxu0 %v353
    %505 = vmatprep.subr.bf16.mxu0 0
    %506 = vmatpush1.bf16.msra.mxu0 %v352
    %507 = vmatprep.subr.bf16.mxu0 0
    %508 = vmatpush2.bf16.msra.mxu0 0
    %509 = vmatprep.subr.bf16.mxu0 0
    %510 = vmatpush2.bf16.msra.mxu0 0
    %511 = vmatprep.subr.bf16.mxu0 0
    %512 = vmatpush2.bf16.msra.mxu0 0
    %513 = vmatprep.subr.bf16.mxu0 0
    %514 = vmatpush2.bf16.msra.mxu0 0
    %515 = vmatprep.subr.bf16.mxu0 0
    %516 = vmatpush2.bf16.msra.mxu0 0
    %517 = vmatprep.subr.bf16.mxu0 0
    %518 = vmatpush2.bf16.msra.mxu0 0
    %519 = vmatprep.subr.bf16.mxu0 0
    %520 = vmatpush2.bf16.msra.mxu0 0
    %521 = vmatprep.subr.bf16.mxu0 0
    %522 = vmatpush2.bf16.msra.mxu0 0
    %523 = vmatprep.mubr.bf16.mxu0 0
    %524 = vmatmul.mubr.bf16.gmra.mxu0 %v489
    %v525 = vpop.f32.mrf.mxu0
    %v526 = vadd.f32 0.0, %v525
    %v527 = vpop.f32.mrf.mxu0
    %v528 = vpop.f32.mrf.mxu0
    %v529 = vadd.f32 0.0, %v528
    %v530 = vpop.f32.mrf.mxu0
    %531 = vdwg.mxu0
    %v532 = vadd.f32 %v482, %v526
    %v533 = vadd.f32 %v483, %v529
    %v534 = vxor.u32 %v532, 2147483648
    %v535 = vxor.u32 %v533, 2147483648
    %v536 = vmul.f32 %v534, 1.442695
    %v537 = vpow.pop %v536
    %v538 = vmul.f32 %v535, 1.442695
    %v539 = vpow.pop %v538
    %v540 = vadd.f32 %v537, 1.0
    %v541 = vadd.f32 %v539, 1.0
    %v542 = vrcp.pop %v540
    %v543 = vmul.f32 1.0, %v542
    %v544 = vrcp.pop %v541
    %v545 = vmul.f32 1.0, %v544
    %v546 = vtanh.pop %v532
    %v547 = vtanh.pop %v533
    %v548 = vmul.f32 %v543, %v445
    %v549 = vmul.f32 %v545, %v446
    %552 = vrot.lane.b32.xlu0 %v546, 64
    %v553 = vpop.permute.xlu0 %552
    %554 = vrot.lane.b32.xlu0 %v547, 64
    %v555 = vpop.permute.xlu0 %554
    %v558 = vmul.f32 %v543, %v553
    %v559 = vmul.f32 %v545, %v555
    %562 = vrot.lane.b32.xlu0 %v558, 32
    %v563 = vpop.permute.xlu0 %562
    %564 = vrot.lane.b32.xlu0 %v559, 32
    %v565 = vpop.permute.xlu0 %564
    %v568 = vadd.f32 %v548, %v563
    %v569 = vadd.f32 %v549, %v565
    %v570 = vtanh.pop %v568
    %v571 = vtanh.pop %v569
    %574 = vrot.lane.b32.xlu0 %v570, 64
    %v575 = vpop.permute.xlu0 %574
    %576 = vrot.lane.b32.xlu0 %v571, 64
    %v577 = vpop.permute.xlu0 %576
    %v580 = vmul.f32 %v543, %v575
    %v581 = vmul.f32 %v545, %v577
    %s582 = sadd.s32 %s334, 1
    %v583 = vstv %s582
    %vm584 = vcmp.eq.s32.totalorder %v328, %v583
    %vm585 = vcmp.eq.s32.totalorder %v329, %v583
    %v586 = vsel %vm584, 1, 0
    %v587 = vsel %vm585, 1, 0
    %588 = vset.pattern.permute.xlu0 0
    %589 = vperm.xlu0 %588, %v586
    %v590 = vpop.permute.xlu0 %589
    %591 = vset.pattern.permute.xlu0 0
    %592 = vperm.xlu0 %591, %v587
    %v593 = vpop.permute.xlu0 %592
    %vm594 = vcmp.eq.s32.totalorder %v590, 1
    %vm595 = vcmp.eq.s32.totalorder %v593, 1
    %v596 = vsel %vm594, %v580, %v480
    %v597 = vsel %vm595, %v581, %v481
    %v598 = vld [vmem:[#allocation2 + $0x20] sm:$0xff]
    %v599 = vld [vmem:[#allocation2 + $0x28] sm:$0xff]
    %v600 = vpack.c.bf16 %v581, %v580
    %602 = vrot.lane.b32.xlu0 %v600, 32
    %v603 = vpop.permute.xlu0 %602
    %v605 = vsel %vm356, %v603, 0
    %607 = vmatprep.subr.bf16.mxu0 0
    %608 = vmatpush1.bf16.msra.mxu0 0
    %609 = vmatprep.subr.bf16.mxu0 0
    %610 = vmatpush1.bf16.msra.mxu0 0
    %611 = vmatprep.subr.bf16.mxu0 0
    %612 = vmatpush1.bf16.msra.mxu0 0
    %613 = vmatprep.subr.bf16.mxu0 0
    %614 = vmatpush1.bf16.msra.mxu0 0
    %615 = vmatprep.subr.bf16.mxu0 0
    %616 = vmatpush1.bf16.msra.mxu0 0
    %617 = vmatprep.subr.bf16.mxu0 0
    %618 = vmatpush1.bf16.msra.mxu0 0
    %619 = vmatprep.subr.bf16.mxu0 0
    %620 = vmatpush1.bf16.msra.mxu0 %v353
    %621 = vmatprep.subr.bf16.mxu0 0
    %622 = vmatpush1.bf16.msra.mxu0 %v352
    %623 = vmatprep.subr.bf16.mxu0 0
    %624 = vmatpush2.bf16.msra.mxu0 0
    %625 = vmatprep.subr.bf16.mxu0 0
    %626 = vmatpush2.bf16.msra.mxu0 0
    %627 = vmatprep.subr.bf16.mxu0 0
    %628 = vmatpush2.bf16.msra.mxu0 0
    %629 = vmatprep.subr.bf16.mxu0 0
    %630 = vmatpush2.bf16.msra.mxu0 0
    %631 = vmatprep.subr.bf16.mxu0 0
    %632 = vmatpush2.bf16.msra.mxu0 0
    %633 = vmatprep.subr.bf16.mxu0 0
    %634 = vmatpush2.bf16.msra.mxu0 0
    %635 = vmatprep.subr.bf16.mxu0 0
    %636 = vmatpush2.bf16.msra.mxu0 0
    %637 = vmatprep.subr.bf16.mxu0 0
    %638 = vmatpush2.bf16.msra.mxu0 0
    %639 = vmatprep.mubr.bf16.mxu0 0
    %640 = vmatmul.mubr.bf16.gmra.mxu0 %v605
    %v641 = vpop.f32.mrf.mxu0
    %v642 = vadd.f32 0.0, %v641
    %v643 = vpop.f32.mrf.mxu0
    %v644 = vpop.f32.mrf.mxu0
    %v645 = vadd.f32 0.0, %v644
    %v646 = vpop.f32.mrf.mxu0
    %647 = vdwg.mxu0
    %v648 = vadd.f32 %v598, %v642
    %v649 = vadd.f32 %v599, %v645
    %v650 = vxor.u32 %v648, 2147483648
    %v651 = vxor.u32 %v649, 2147483648
    %v652 = vmul.f32 %v650, 1.442695
    %v653 = vpow.pop %v652
    %v654 = vmul.f32 %v651, 1.442695
    %v655 = vpow.pop %v654
    %v656 = vadd.f32 %v653, 1.0
    %v657 = vadd.f32 %v655, 1.0
    %v658 = vrcp.pop %v656
    %v659 = vmul.f32 1.0, %v658
    %v660 = vrcp.pop %v657
    %v661 = vmul.f32 1.0, %v660
    %v662 = vtanh.pop %v648
    %v663 = vtanh.pop %v649
    %v664 = vmul.f32 %v659, %v568
    %v665 = vmul.f32 %v661, %v569
    %668 = vrot.lane.b32.xlu0 %v662, 64
    %v669 = vpop.permute.xlu0 %668
    %670 = vrot.lane.b32.xlu0 %v663, 64
    %v671 = vpop.permute.xlu0 %670
    %v674 = vmul.f32 %v659, %v669
    %v675 = vmul.f32 %v661, %v671
    %678 = vrot.lane.b32.xlu0 %v674, 32
    %v679 = vpop.permute.xlu0 %678
    %680 = vrot.lane.b32.xlu0 %v675, 32
    %v681 = vpop.permute.xlu0 %680
    %v684 = vadd.f32 %v664, %v679
    %v685 = vadd.f32 %v665, %v681
    %v686 = vtanh.pop %v684
    %v687 = vtanh.pop %v685
    %690 = vrot.lane.b32.xlu0 %v686, 64
    %v691 = vpop.permute.xlu0 %690
    %692 = vrot.lane.b32.xlu0 %v687, 64
    %v693 = vpop.permute.xlu0 %692
    %v696 = vmul.f32 %v659, %v691
    %v697 = vmul.f32 %v661, %v693
    %s698 = sadd.s32 %s334, 2
    %v699 = vstv %s698
    %vm700 = vcmp.eq.s32.totalorder %v328, %v699
    %vm701 = vcmp.eq.s32.totalorder %v329, %v699
    %v702 = vsel %vm700, 1, 0
    %v703 = vsel %vm701, 1, 0
    %704 = vset.pattern.permute.xlu0 0
    %705 = vperm.xlu0 %704, %v702
    %v706 = vpop.permute.xlu0 %705
    %707 = vset.pattern.permute.xlu0 0
    %708 = vperm.xlu0 %707, %v703
    %v709 = vpop.permute.xlu0 %708
    %vm710 = vcmp.eq.s32.totalorder %v706, 1
    %vm711 = vcmp.eq.s32.totalorder %v709, 1
    %v712 = vsel %vm710, %v696, %v596
    %v713 = vsel %vm711, %v697, %v597
    %v714 = vld [vmem:[#allocation2 + $0x30] sm:$0xff]
    %v715 = vld [vmem:[#allocation2 + $0x38] sm:$0xff]
    %v716 = vpack.c.bf16 %v697, %v696
    %718 = vrot.lane.b32.xlu0 %v716, 32
    %v719 = vpop.permute.xlu0 %718
    %v721 = vsel %vm356, %v719, 0
    %723 = vmatprep.subr.bf16.mxu0 0
    %724 = vmatpush1.bf16.msra.mxu0 0
    %725 = vmatprep.subr.bf16.mxu0 0
    %726 = vmatpush1.bf16.msra.mxu0 0
    %727 = vmatprep.subr.bf16.mxu0 0
    %728 = vmatpush1.bf16.msra.mxu0 0
    %729 = vmatprep.subr.bf16.mxu0 0
    %730 = vmatpush1.bf16.msra.mxu0 0
    %731 = vmatprep.subr.bf16.mxu0 0
    %732 = vmatpush1.bf16.msra.mxu0 0
    %733 = vmatprep.subr.bf16.mxu0 0
    %734 = vmatpush1.bf16.msra.mxu0 0
    %735 = vmatprep.subr.bf16.mxu0 0
    %736 = vmatpush1.bf16.msra.mxu0 %v353
    %737 = vmatprep.subr.bf16.mxu0 0
    %738 = vmatpush1.bf16.msra.mxu0 %v352
    %739 = vmatprep.subr.bf16.mxu0 0
    %740 = vmatpush2.bf16.msra.mxu0 0
    %741 = vmatprep.subr.bf16.mxu0 0
    %742 = vmatpush2.bf16.msra.mxu0 0
    %743 = vmatprep.subr.bf16.mxu0 0
    %744 = vmatpush2.bf16.msra.mxu0 0
    %745 = vmatprep.subr.bf16.mxu0 0
    %746 = vmatpush2.bf16.msra.mxu0 0
    %747 = vmatprep.subr.bf16.mxu0 0
    %748 = vmatpush2.bf16.msra.mxu0 0
    %749 = vmatprep.subr.bf16.mxu0 0
    %750 = vmatpush2.bf16.msra.mxu0 0
    %751 = vmatprep.subr.bf16.mxu0 0
    %752 = vmatpush2.bf16.msra.mxu0 0
    %753 = vmatprep.subr.bf16.mxu0 0
    %754 = vmatpush2.bf16.msra.mxu0 0
    %755 = vmatprep.mubr.bf16.mxu0 0
    %756 = vmatmul.mubr.bf16.gmra.mxu0 %v721
    %v757 = vpop.f32.mrf.mxu0
    %v758 = vadd.f32 0.0, %v757
    %v759 = vpop.f32.mrf.mxu0
    %v760 = vpop.f32.mrf.mxu0
    %v761 = vadd.f32 0.0, %v760
    %v762 = vpop.f32.mrf.mxu0
    %763 = vdwg.mxu0
    %v764 = vadd.f32 %v714, %v758
    %v765 = vadd.f32 %v715, %v761
    %v766 = vxor.u32 %v764, 2147483648
    %v767 = vxor.u32 %v765, 2147483648
    %v768 = vmul.f32 %v766, 1.442695
    %v769 = vpow.pop %v768
    %v770 = vmul.f32 %v767, 1.442695
    %v771 = vpow.pop %v770
    %v772 = vadd.f32 %v769, 1.0
    %v773 = vadd.f32 %v771, 1.0
    %v774 = vrcp.pop %v772
    %v775 = vmul.f32 1.0, %v774
    %v776 = vrcp.pop %v773
    %v777 = vmul.f32 1.0, %v776
    %v778 = vtanh.pop %v764
    %v779 = vtanh.pop %v765
    %v780 = vmul.f32 %v775, %v684
    %v781 = vmul.f32 %v777, %v685
    %784 = vrot.lane.b32.xlu0 %v778, 64
    %v785 = vpop.permute.xlu0 %784
    %786 = vrot.lane.b32.xlu0 %v779, 64
    %v787 = vpop.permute.xlu0 %786
    %v790 = vmul.f32 %v775, %v785
    %v791 = vmul.f32 %v777, %v787
    %794 = vrot.lane.b32.xlu0 %v790, 32
    %v795 = vpop.permute.xlu0 %794
    %796 = vrot.lane.b32.xlu0 %v791, 32
    %v797 = vpop.permute.xlu0 %796
    %v800 = vadd.f32 %v780, %v795
    %v801 = vadd.f32 %v781, %v797
    %v802 = vtanh.pop %v800
    %v803 = vtanh.pop %v801
    %806 = vrot.lane.b32.xlu0 %v802, 64
    %v807 = vpop.permute.xlu0 %806
    %808 = vrot.lane.b32.xlu0 %v803, 64
    %v809 = vpop.permute.xlu0 %808
    %v812 = vmul.f32 %v775, %v807
    %v813 = vmul.f32 %v777, %v809
    %s814 = sadd.s32 %s334, 3
    %v815 = vstv %s814
    %vm816 = vcmp.eq.s32.totalorder %v328, %v815
    %vm817 = vcmp.eq.s32.totalorder %v329, %v815
    %v818 = vsel %vm816, 1, 0
    %v819 = vsel %vm817, 1, 0
    %820 = vset.pattern.permute.xlu0 0
    %821 = vperm.xlu0 %820, %v818
    %v822 = vpop.permute.xlu0 %821
    %823 = vset.pattern.permute.xlu0 0
    %824 = vperm.xlu0 %823, %v819
    %v825 = vpop.permute.xlu0 %824
    %vm826 = vcmp.eq.s32.totalorder %v822, 1
    %vm827 = vcmp.eq.s32.totalorder %v825, 1
    %v828 = vsel %vm826, %v812, %v712
    %v829 = vsel %vm827, %v813, %v713
    %v830 = vld [vmem:[#allocation2 + $0x40] sm:$0xff]
    %v831 = vld [vmem:[#allocation2 + $0x48] sm:$0xff]
    %v832 = vpack.c.bf16 %v813, %v812
    %834 = vrot.lane.b32.xlu0 %v832, 32
    %v835 = vpop.permute.xlu0 %834
    %v837 = vsel %vm356, %v835, 0
    %839 = vmatprep.subr.bf16.mxu0 0
    %840 = vmatpush1.bf16.msra.mxu0 0
    %841 = vmatprep.subr.bf16.mxu0 0
    %842 = vmatpush1.bf16.msra.mxu0 0
    %843 = vmatprep.subr.bf16.mxu0 0
    %844 = vmatpush1.bf16.msra.mxu0 0
    %845 = vmatprep.subr.bf16.mxu0 0
    %846 = vmatpush1.bf16.msra.mxu0 0
    %847 = vmatprep.subr.bf16.mxu0 0
    %848 = vmatpush1.bf16.msra.mxu0 0
    %849 = vmatprep.subr.bf16.mxu0 0
    %850 = vmatpush1.bf16.msra.mxu0 0
    %851 = vmatprep.subr.bf16.mxu0 0
    %852 = vmatpush1.bf16.msra.mxu0 %v353
    %853 = vmatprep.subr.bf16.mxu0 0
    %854 = vmatpush1.bf16.msra.mxu0 %v352
    %855 = vmatprep.subr.bf16.mxu0 0
    %856 = vmatpush2.bf16.msra.mxu0 0
    %857 = vmatprep.subr.bf16.mxu0 0
    %858 = vmatpush2.bf16.msra.mxu0 0
    %859 = vmatprep.subr.bf16.mxu0 0
    %860 = vmatpush2.bf16.msra.mxu0 0
    %861 = vmatprep.subr.bf16.mxu0 0
    %862 = vmatpush2.bf16.msra.mxu0 0
    %863 = vmatprep.subr.bf16.mxu0 0
    %864 = vmatpush2.bf16.msra.mxu0 0
    %865 = vmatprep.subr.bf16.mxu0 0
    %866 = vmatpush2.bf16.msra.mxu0 0
    %867 = vmatprep.subr.bf16.mxu0 0
    %868 = vmatpush2.bf16.msra.mxu0 0
    %869 = vmatprep.subr.bf16.mxu0 0
    %870 = vmatpush2.bf16.msra.mxu0 0
    %871 = vmatprep.mubr.bf16.mxu0 0
    %872 = vmatmul.mubr.bf16.gmra.mxu0 %v837
    %v873 = vpop.f32.mrf.mxu0
    %v874 = vadd.f32 0.0, %v873
    %v875 = vpop.f32.mrf.mxu0
    %v876 = vpop.f32.mrf.mxu0
    %v877 = vadd.f32 0.0, %v876
    %v878 = vpop.f32.mrf.mxu0
    %879 = vdwg.mxu0
    %v880 = vadd.f32 %v830, %v874
    %v881 = vadd.f32 %v831, %v877
    %v882 = vxor.u32 %v880, 2147483648
    %v883 = vxor.u32 %v881, 2147483648
    %v884 = vmul.f32 %v882, 1.442695
    %v885 = vpow.pop %v884
    %v886 = vmul.f32 %v883, 1.442695
    %v887 = vpow.pop %v886
    %v888 = vadd.f32 %v885, 1.0
    %v889 = vadd.f32 %v887, 1.0
    %v890 = vrcp.pop %v888
    %v891 = vmul.f32 1.0, %v890
    %v892 = vrcp.pop %v889
    %v893 = vmul.f32 1.0, %v892
    %v894 = vtanh.pop %v880
    %v895 = vtanh.pop %v881
    %v896 = vmul.f32 %v891, %v800
    %v897 = vmul.f32 %v893, %v801
    %900 = vrot.lane.b32.xlu0 %v894, 64
    %v901 = vpop.permute.xlu0 %900
    %902 = vrot.lane.b32.xlu0 %v895, 64
    %v903 = vpop.permute.xlu0 %902
    %v906 = vmul.f32 %v891, %v901
    %v907 = vmul.f32 %v893, %v903
    %910 = vrot.lane.b32.xlu0 %v906, 32
    %v911 = vpop.permute.xlu0 %910
    %912 = vrot.lane.b32.xlu0 %v907, 32
    %v913 = vpop.permute.xlu0 %912
    %v916 = vadd.f32 %v896, %v911
    %v917 = vadd.f32 %v897, %v913
    %v918 = vtanh.pop %v916
    %v919 = vtanh.pop %v917
    %922 = vrot.lane.b32.xlu0 %v918, 64
    %v923 = vpop.permute.xlu0 %922
    %924 = vrot.lane.b32.xlu0 %v919, 64
    %v925 = vpop.permute.xlu0 %924
    %v928 = vmul.f32 %v891, %v923
    %v929 = vmul.f32 %v893, %v925
    %s930 = sadd.s32 %s334, 4
    %v931 = vstv %s930
    %vm932 = vcmp.eq.s32.totalorder %v328, %v931
    %vm933 = vcmp.eq.s32.totalorder %v329, %v931
    %v934 = vsel %vm932, 1, 0
    %v935 = vsel %vm933, 1, 0
    %936 = vset.pattern.permute.xlu0 0
    %937 = vperm.xlu0 %936, %v934
    %v938 = vpop.permute.xlu0 %937
    %939 = vset.pattern.permute.xlu0 0
    %940 = vperm.xlu0 %939, %v935
    %v941 = vpop.permute.xlu0 %940
    %vm942 = vcmp.eq.s32.totalorder %v938, 1
    %vm943 = vcmp.eq.s32.totalorder %v941, 1
    %v944 = vsel %vm942, %v928, %v828
    %v945 = vsel %vm943, %v929, %v829
    %v946 = vld [vmem:[#allocation2 + $0x50] sm:$0xff]
    %v947 = vld [vmem:[#allocation2 + $0x58] sm:$0xff]
    %v948 = vpack.c.bf16 %v929, %v928
    %950 = vrot.lane.b32.xlu0 %v948, 32
    %v951 = vpop.permute.xlu0 %950
    %v953 = vsel %vm356, %v951, 0
    %955 = vmatprep.subr.bf16.mxu0 0
    %956 = vmatpush1.bf16.msra.mxu0 0
    %957 = vmatprep.subr.bf16.mxu0 0
    %958 = vmatpush1.bf16.msra.mxu0 0
    %959 = vmatprep.subr.bf16.mxu0 0
    %960 = vmatpush1.bf16.msra.mxu0 0
    %961 = vmatprep.subr.bf16.mxu0 0
    %962 = vmatpush1.bf16.msra.mxu0 0
    %963 = vmatprep.subr.bf16.mxu0 0
    %964 = vmatpush1.bf16.msra.mxu0 0
    %965 = vmatprep.subr.bf16.mxu0 0
    %966 = vmatpush1.bf16.msra.mxu0 0
    %967 = vmatprep.subr.bf16.mxu0 0
    %968 = vmatpush1.bf16.msra.mxu0 %v353
    %969 = vmatprep.subr.bf16.mxu0 0
    %970 = vmatpush1.bf16.msra.mxu0 %v352
    %971 = vmatprep.subr.bf16.mxu0 0
    %972 = vmatpush2.bf16.msra.mxu0 0
    %973 = vmatprep.subr.bf16.mxu0 0
    %974 = vmatpush2.bf16.msra.mxu0 0
    %975 = vmatprep.subr.bf16.mxu0 0
    %976 = vmatpush2.bf16.msra.mxu0 0
    %977 = vmatprep.subr.bf16.mxu0 0
    %978 = vmatpush2.bf16.msra.mxu0 0
    %979 = vmatprep.subr.bf16.mxu0 0
    %980 = vmatpush2.bf16.msra.mxu0 0
    %981 = vmatprep.subr.bf16.mxu0 0
    %982 = vmatpush2.bf16.msra.mxu0 0
    %983 = vmatprep.subr.bf16.mxu0 0
    %984 = vmatpush2.bf16.msra.mxu0 0
    %985 = vmatprep.subr.bf16.mxu0 0
    %986 = vmatpush2.bf16.msra.mxu0 0
    %987 = vmatprep.mubr.bf16.mxu0 0
    %988 = vmatmul.mubr.bf16.gmra.mxu0 %v953
    %v989 = vpop.f32.mrf.mxu0
    %v990 = vadd.f32 0.0, %v989
    %v991 = vpop.f32.mrf.mxu0
    %v992 = vpop.f32.mrf.mxu0
    %v993 = vadd.f32 0.0, %v992
    %v994 = vpop.f32.mrf.mxu0
    %995 = vdwg.mxu0
    %v996 = vadd.f32 %v946, %v990
    %v997 = vadd.f32 %v947, %v993
    %v998 = vxor.u32 %v996, 2147483648
    %v999 = vxor.u32 %v997, 2147483648
    %v1000 = vmul.f32 %v998, 1.442695
    %v1001 = vpow.pop %v1000
    %v1002 = vmul.f32 %v999, 1.442695
    %v1003 = vpow.pop %v1002
    %v1004 = vadd.f32 %v1001, 1.0
    %v1005 = vadd.f32 %v1003, 1.0
    %v1006 = vrcp.pop %v1004
    %v1007 = vmul.f32 1.0, %v1006
    %v1008 = vrcp.pop %v1005
    %v1009 = vmul.f32 1.0, %v1008
    %v1010 = vtanh.pop %v996
    %v1011 = vtanh.pop %v997
    %v1012 = vmul.f32 %v1007, %v916
    %v1013 = vmul.f32 %v1009, %v917
    %1016 = vrot.lane.b32.xlu0 %v1010, 64
    %v1017 = vpop.permute.xlu0 %1016
    %1018 = vrot.lane.b32.xlu0 %v1011, 64
    %v1019 = vpop.permute.xlu0 %1018
    %v1022 = vmul.f32 %v1007, %v1017
    %v1023 = vmul.f32 %v1009, %v1019
    %1026 = vrot.lane.b32.xlu0 %v1022, 32
    %v1027 = vpop.permute.xlu0 %1026
    %1028 = vrot.lane.b32.xlu0 %v1023, 32
    %v1029 = vpop.permute.xlu0 %1028
    %v1032 = vadd.f32 %v1012, %v1027
    %v1033 = vadd.f32 %v1013, %v1029
    %v1034 = vtanh.pop %v1032
    %v1035 = vtanh.pop %v1033
    %1038 = vrot.lane.b32.xlu0 %v1034, 64
    %v1039 = vpop.permute.xlu0 %1038
    %1040 = vrot.lane.b32.xlu0 %v1035, 64
    %v1041 = vpop.permute.xlu0 %1040
    %v1044 = vmul.f32 %v1007, %v1039
    %v1045 = vmul.f32 %v1009, %v1041
    %s1046 = sadd.s32 %s334, 5
    %v1047 = vstv %s1046
    %vm1048 = vcmp.eq.s32.totalorder %v328, %v1047
    %vm1049 = vcmp.eq.s32.totalorder %v329, %v1047
    %v1050 = vsel %vm1048, 1, 0
    %v1051 = vsel %vm1049, 1, 0
    %1052 = vset.pattern.permute.xlu0 0
    %1053 = vperm.xlu0 %1052, %v1050
    %v1054 = vpop.permute.xlu0 %1053
    %1055 = vset.pattern.permute.xlu0 0
    %1056 = vperm.xlu0 %1055, %v1051
    %v1057 = vpop.permute.xlu0 %1056
    %vm1058 = vcmp.eq.s32.totalorder %v1054, 1
    %vm1059 = vcmp.eq.s32.totalorder %v1057, 1
    %v1060 = vsel %vm1058, %v1044, %v944
    %v1061 = vsel %vm1059, %v1045, %v945
    %v1062 = vld [vmem:[#allocation2 + $0x60] sm:$0xff]
    %v1063 = vld [vmem:[#allocation2 + $0x68] sm:$0xff]
    %v1064 = vpack.c.bf16 %v1045, %v1044
    %1066 = vrot.lane.b32.xlu0 %v1064, 32
    %v1067 = vpop.permute.xlu0 %1066
    %v1069 = vsel %vm356, %v1067, 0
    %1071 = vmatprep.subr.bf16.mxu0 0
    %1072 = vmatpush1.bf16.msra.mxu0 0
    %1073 = vmatprep.subr.bf16.mxu0 0
    %1074 = vmatpush1.bf16.msra.mxu0 0
    %1075 = vmatprep.subr.bf16.mxu0 0
    %1076 = vmatpush1.bf16.msra.mxu0 0
    %1077 = vmatprep.subr.bf16.mxu0 0
    %1078 = vmatpush1.bf16.msra.mxu0 0
    %1079 = vmatprep.subr.bf16.mxu0 0
    %1080 = vmatpush1.bf16.msra.mxu0 0
    %1081 = vmatprep.subr.bf16.mxu0 0
    %1082 = vmatpush1.bf16.msra.mxu0 0
    %1083 = vmatprep.subr.bf16.mxu0 0
    %1084 = vmatpush1.bf16.msra.mxu0 %v353
    %1085 = vmatprep.subr.bf16.mxu0 0
    %1086 = vmatpush1.bf16.msra.mxu0 %v352
    %1087 = vmatprep.subr.bf16.mxu0 0
    %1088 = vmatpush2.bf16.msra.mxu0 0
    %1089 = vmatprep.subr.bf16.mxu0 0
    %1090 = vmatpush2.bf16.msra.mxu0 0
    %1091 = vmatprep.subr.bf16.mxu0 0
    %1092 = vmatpush2.bf16.msra.mxu0 0
    %1093 = vmatprep.subr.bf16.mxu0 0
    %1094 = vmatpush2.bf16.msra.mxu0 0
    %1095 = vmatprep.subr.bf16.mxu0 0
    %1096 = vmatpush2.bf16.msra.mxu0 0
    %1097 = vmatprep.subr.bf16.mxu0 0
    %1098 = vmatpush2.bf16.msra.mxu0 0
    %1099 = vmatprep.subr.bf16.mxu0 0
    %1100 = vmatpush2.bf16.msra.mxu0 0
    %1101 = vmatprep.subr.bf16.mxu0 0
    %1102 = vmatpush2.bf16.msra.mxu0 0
    %1103 = vmatprep.mubr.bf16.mxu0 0
    %1104 = vmatmul.mubr.bf16.gmra.mxu0 %v1069
    %v1105 = vpop.f32.mrf.mxu0
    %v1106 = vadd.f32 0.0, %v1105
    %v1107 = vpop.f32.mrf.mxu0
    %v1108 = vpop.f32.mrf.mxu0
    %v1109 = vadd.f32 0.0, %v1108
    %v1110 = vpop.f32.mrf.mxu0
    %1111 = vdwg.mxu0
    %v1112 = vadd.f32 %v1062, %v1106
    %v1113 = vadd.f32 %v1063, %v1109
    %v1114 = vxor.u32 %v1112, 2147483648
    %v1115 = vxor.u32 %v1113, 2147483648
    %v1116 = vmul.f32 %v1114, 1.442695
    %v1117 = vpow.pop %v1116
    %v1118 = vmul.f32 %v1115, 1.442695
    %v1119 = vpow.pop %v1118
    %v1120 = vadd.f32 %v1117, 1.0
    %v1121 = vadd.f32 %v1119, 1.0
    %v1122 = vrcp.pop %v1120
    %v1123 = vmul.f32 1.0, %v1122
    %v1124 = vrcp.pop %v1121
    %v1125 = vmul.f32 1.0, %v1124
    %v1126 = vtanh.pop %v1112
    %v1127 = vtanh.pop %v1113
    %v1128 = vmul.f32 %v1123, %v1032
    %v1129 = vmul.f32 %v1125, %v1033
    %1132 = vrot.lane.b32.xlu0 %v1126, 64
    %v1133 = vpop.permute.xlu0 %1132
    %1134 = vrot.lane.b32.xlu0 %v1127, 64
    %v1135 = vpop.permute.xlu0 %1134
    %v1138 = vmul.f32 %v1123, %v1133
    %v1139 = vmul.f32 %v1125, %v1135
    %1142 = vrot.lane.b32.xlu0 %v1138, 32
    %v1143 = vpop.permute.xlu0 %1142
    %1144 = vrot.lane.b32.xlu0 %v1139, 32
    %v1145 = vpop.permute.xlu0 %1144
    %v1148 = vadd.f32 %v1128, %v1143
    %v1149 = vadd.f32 %v1129, %v1145
    %v1150 = vtanh.pop %v1148
    %v1151 = vtanh.pop %v1149
    %1154 = vrot.lane.b32.xlu0 %v1150, 64
    %v1155 = vpop.permute.xlu0 %1154
    %1156 = vrot.lane.b32.xlu0 %v1151, 64
    %v1157 = vpop.permute.xlu0 %1156
    %v1160 = vmul.f32 %v1123, %v1155
    %v1161 = vmul.f32 %v1125, %v1157
    %s1162 = sadd.s32 %s334, 6
    %v1163 = vstv %s1162
    %vm1164 = vcmp.eq.s32.totalorder %v328, %v1163
    %vm1165 = vcmp.eq.s32.totalorder %v329, %v1163
    %v1166 = vsel %vm1164, 1, 0
    %v1167 = vsel %vm1165, 1, 0
    %1168 = vset.pattern.permute.xlu0 0
    %1169 = vperm.xlu0 %1168, %v1166
    %v1170 = vpop.permute.xlu0 %1169
    %1171 = vset.pattern.permute.xlu0 0
    %1172 = vperm.xlu0 %1171, %v1167
    %v1173 = vpop.permute.xlu0 %1172
    %vm1174 = vcmp.eq.s32.totalorder %v1170, 1
    %vm1175 = vcmp.eq.s32.totalorder %v1173, 1
    %v1176 = vsel %vm1174, %v1160, %v1060
    %v1177 = vsel %vm1175, %v1161, %v1061
    %v1178 = vld [vmem:[#allocation2 + $0x70] sm:$0xff]
    %v1179 = vld [vmem:[#allocation2 + $0x78] sm:$0xff]
    %v1180 = vpack.c.bf16 %v1161, %v1160
    %1182 = vrot.lane.b32.xlu0 %v1180, 32
    %v1183 = vpop.permute.xlu0 %1182
    %v1185 = vsel %vm356, %v1183, 0
    %1187 = vmatprep.subr.bf16.mxu0 0
    %1188 = vmatpush1.bf16.msra.mxu0 0
    %1189 = vmatprep.subr.bf16.mxu0 0
    %1190 = vmatpush1.bf16.msra.mxu0 0
    %1191 = vmatprep.subr.bf16.mxu0 0
    %1192 = vmatpush1.bf16.msra.mxu0 0
    %1193 = vmatprep.subr.bf16.mxu0 0
    %1194 = vmatpush1.bf16.msra.mxu0 0
    %1195 = vmatprep.subr.bf16.mxu0 0
    %1196 = vmatpush1.bf16.msra.mxu0 0
    %1197 = vmatprep.subr.bf16.mxu0 0
    %1198 = vmatpush1.bf16.msra.mxu0 0
    %1199 = vmatprep.subr.bf16.mxu0 0
    %1200 = vmatpush1.bf16.msra.mxu0 %v353
    %1201 = vmatprep.subr.bf16.mxu0 0
    %1202 = vmatpush1.bf16.msra.mxu0 %v352
    %1203 = vmatprep.subr.bf16.mxu0 0
    %1204 = vmatpush2.bf16.msra.mxu0 0
    %1205 = vmatprep.subr.bf16.mxu0 0
    %1206 = vmatpush2.bf16.msra.mxu0 0
    %1207 = vmatprep.subr.bf16.mxu0 0
    %1208 = vmatpush2.bf16.msra.mxu0 0
    %1209 = vmatprep.subr.bf16.mxu0 0
    %1210 = vmatpush2.bf16.msra.mxu0 0
    %1211 = vmatprep.subr.bf16.mxu0 0
    %1212 = vmatpush2.bf16.msra.mxu0 0
    %1213 = vmatprep.subr.bf16.mxu0 0
    %1214 = vmatpush2.bf16.msra.mxu0 0
    %1215 = vmatprep.subr.bf16.mxu0 0
    %1216 = vmatpush2.bf16.msra.mxu0 0
    %1217 = vmatprep.subr.bf16.mxu0 0
    %1218 = vmatpush2.bf16.msra.mxu0 0
    %1219 = vmatprep.mubr.bf16.mxu0 0
    %1220 = vmatmul.mubr.bf16.gmra.mxu0 %v1185
    %v1221 = vpop.f32.mrf.mxu0
    %v1222 = vadd.f32 0.0, %v1221
    %v1223 = vpop.f32.mrf.mxu0
    %v1224 = vpop.f32.mrf.mxu0
    %v1225 = vadd.f32 0.0, %v1224
    %v1226 = vpop.f32.mrf.mxu0
    %1227 = vdwg.mxu0
    %v1228 = vadd.f32 %v1178, %v1222
    %v1229 = vadd.f32 %v1179, %v1225
    %v1230 = vxor.u32 %v1228, 2147483648
    %v1231 = vxor.u32 %v1229, 2147483648
    %v1232 = vmul.f32 %v1230, 1.442695
    %v1233 = vpow.pop %v1232
    %v1234 = vmul.f32 %v1231, 1.442695
    %v1235 = vpow.pop %v1234
    %v1236 = vadd.f32 %v1233, 1.0
    %v1237 = vadd.f32 %v1235, 1.0
    %v1238 = vrcp.pop %v1236
    %v1239 = vmul.f32 1.0, %v1238
    %v1240 = vrcp.pop %v1237
    %v1241 = vmul.f32 1.0, %v1240
    %v1242 = vtanh.pop %v1228
    %v1243 = vtanh.pop %v1229
    %v1244 = vmul.f32 %v1239, %v1148
    %v1245 = vmul.f32 %v1241, %v1149
    %1248 = vrot.lane.b32.xlu0 %v1242, 64
    %v1249 = vpop.permute.xlu0 %1248
    %1250 = vrot.lane.b32.xlu0 %v1243, 64
    %v1251 = vpop.permute.xlu0 %1250
    %v1254 = vmul.f32 %v1239, %v1249
    %v1255 = vmul.f32 %v1241, %v1251
    %1258 = vrot.lane.b32.xlu0 %v1254, 32
    %v1259 = vpop.permute.xlu0 %1258
    %1260 = vrot.lane.b32.xlu0 %v1255, 32
    %v1261 = vpop.permute.xlu0 %1260
    %v1264 = vadd.f32 %v1244, %v1259
    %v1265 = vadd.f32 %v1245, %v1261
    %v1266 = vtanh.pop %v1264
    %v1267 = vtanh.pop %v1265
    %1270 = vrot.lane.b32.xlu0 %v1266, 64
    %v1271 = vpop.permute.xlu0 %1270
    %1272 = vrot.lane.b32.xlu0 %v1267, 64
    %v1273 = vpop.permute.xlu0 %1272
    %v1276 = vmul.f32 %v1239, %v1271
    %v1277 = vmul.f32 %v1241, %v1273
    %s1278 = sadd.s32 %s334, 7
    %v1279 = vstv %s1278
    %vm1280 = vcmp.eq.s32.totalorder %v328, %v1279
    %vm1281 = vcmp.eq.s32.totalorder %v329, %v1279
    %v1282 = vsel %vm1280, 1, 0
    %v1283 = vsel %vm1281, 1, 0
    %1284 = vset.pattern.permute.xlu0 0
    %1285 = vperm.xlu0 %1284, %v1282
    %v1286 = vpop.permute.xlu0 %1285
    %1287 = vset.pattern.permute.xlu0 0
    %1288 = vperm.xlu0 %1287, %v1283
    %v1289 = vpop.permute.xlu0 %1288
    %vm1290 = vcmp.eq.s32.totalorder %v1286, 1
    %vm1291 = vcmp.eq.s32.totalorder %v1289, 1
    %v1292 = vsel %vm1290, %v1276, %v1176
    %v1293 = vsel %vm1291, %v1277, %v1177
    %v1294 = vld [vmem:[#allocation2 + $0x80] sm:$0xff]
    %v1295 = vld [vmem:[#allocation2 + $0x88] sm:$0xff]
    %v1296 = vpack.c.bf16 %v1277, %v1276
    %1298 = vrot.lane.b32.xlu0 %v1296, 32
    %v1299 = vpop.permute.xlu0 %1298
    %v1301 = vsel %vm356, %v1299, 0
    %1303 = vmatprep.subr.bf16.mxu0 0
    %1304 = vmatpush1.bf16.msra.mxu0 0
    %1305 = vmatprep.subr.bf16.mxu0 0
    %1306 = vmatpush1.bf16.msra.mxu0 0
    %1307 = vmatprep.subr.bf16.mxu0 0
    %1308 = vmatpush1.bf16.msra.mxu0 0
    %1309 = vmatprep.subr.bf16.mxu0 0
    %1310 = vmatpush1.bf16.msra.mxu0 0
    %1311 = vmatprep.subr.bf16.mxu0 0
    %1312 = vmatpush1.bf16.msra.mxu0 0
    %1313 = vmatprep.subr.bf16.mxu0 0
    %1314 = vmatpush1.bf16.msra.mxu0 0
    %1315 = vmatprep.subr.bf16.mxu0 0
    %1316 = vmatpush1.bf16.msra.mxu0 %v353
    %1317 = vmatprep.subr.bf16.mxu0 0
    %1318 = vmatpush1.bf16.msra.mxu0 %v352
    %1319 = vmatprep.subr.bf16.mxu0 0
    %1320 = vmatpush2.bf16.msra.mxu0 0
    %1321 = vmatprep.subr.bf16.mxu0 0
    %1322 = vmatpush2.bf16.msra.mxu0 0
    %1323 = vmatprep.subr.bf16.mxu0 0
    %1324 = vmatpush2.bf16.msra.mxu0 0
    %1325 = vmatprep.subr.bf16.mxu0 0
    %1326 = vmatpush2.bf16.msra.mxu0 0
    %1327 = vmatprep.subr.bf16.mxu0 0
    %1328 = vmatpush2.bf16.msra.mxu0 0
    %1329 = vmatprep.subr.bf16.mxu0 0
    %1330 = vmatpush2.bf16.msra.mxu0 0
    %1331 = vmatprep.subr.bf16.mxu0 0
    %1332 = vmatpush2.bf16.msra.mxu0 0
    %1333 = vmatprep.subr.bf16.mxu0 0
    %1334 = vmatpush2.bf16.msra.mxu0 0
    %1335 = vmatprep.mubr.bf16.mxu0 0
    %1336 = vmatmul.mubr.bf16.gmra.mxu0 %v1301
    %v1337 = vpop.f32.mrf.mxu0
    %v1338 = vadd.f32 0.0, %v1337
    %v1339 = vpop.f32.mrf.mxu0
    %v1340 = vpop.f32.mrf.mxu0
    %v1341 = vadd.f32 0.0, %v1340
    %v1342 = vpop.f32.mrf.mxu0
    %1343 = vdwg.mxu0
    %v1344 = vadd.f32 %v1294, %v1338
    %v1345 = vadd.f32 %v1295, %v1341
    %v1346 = vxor.u32 %v1344, 2147483648
    %v1347 = vxor.u32 %v1345, 2147483648
    %v1348 = vmul.f32 %v1346, 1.442695
    %v1349 = vpow.pop %v1348
    %v1350 = vmul.f32 %v1347, 1.442695
    %v1351 = vpow.pop %v1350
    %v1352 = vadd.f32 %v1349, 1.0
    %v1353 = vadd.f32 %v1351, 1.0
    %v1354 = vrcp.pop %v1352
    %v1355 = vmul.f32 1.0, %v1354
    %v1356 = vrcp.pop %v1353
    %v1357 = vmul.f32 1.0, %v1356
    %v1358 = vtanh.pop %v1344
    %v1359 = vtanh.pop %v1345
    %v1360 = vmul.f32 %v1355, %v1264
    %v1361 = vmul.f32 %v1357, %v1265
    %1364 = vrot.lane.b32.xlu0 %v1358, 64
    %v1365 = vpop.permute.xlu0 %1364
    %1366 = vrot.lane.b32.xlu0 %v1359, 64
    %v1367 = vpop.permute.xlu0 %1366
    %v1370 = vmul.f32 %v1355, %v1365
    %v1371 = vmul.f32 %v1357, %v1367
    %1374 = vrot.lane.b32.xlu0 %v1370, 32
    %v1375 = vpop.permute.xlu0 %1374
    %1376 = vrot.lane.b32.xlu0 %v1371, 32
    %v1377 = vpop.permute.xlu0 %1376
    %v1380 = vadd.f32 %v1360, %v1375
    %v1381 = vadd.f32 %v1361, %v1377
    %v1382 = vtanh.pop %v1380
    %v1383 = vtanh.pop %v1381
    %1386 = vrot.lane.b32.xlu0 %v1382, 64
    %v1387 = vpop.permute.xlu0 %1386
    %1388 = vrot.lane.b32.xlu0 %v1383, 64
    %v1389 = vpop.permute.xlu0 %1388
    %v1392 = vmul.f32 %v1355, %v1387
    %v1393 = vmul.f32 %v1357, %v1389
    %s1394 = sadd.s32 %s334, 8
    %v1395 = vstv %s1394
    %vm1396 = vcmp.eq.s32.totalorder %v328, %v1395
    %vm1397 = vcmp.eq.s32.totalorder %v329, %v1395
    %v1398 = vsel %vm1396, 1, 0
    %v1399 = vsel %vm1397, 1, 0
    %1400 = vset.pattern.permute.xlu0 0
    %1401 = vperm.xlu0 %1400, %v1398
    %v1402 = vpop.permute.xlu0 %1401
    %1403 = vset.pattern.permute.xlu0 0
    %1404 = vperm.xlu0 %1403, %v1399
    %v1405 = vpop.permute.xlu0 %1404
    %vm1406 = vcmp.eq.s32.totalorder %v1402, 1
    %vm1407 = vcmp.eq.s32.totalorder %v1405, 1
    %v1408 = vsel %vm1406, %v1392, %v1292
    %v1409 = vsel %vm1407, %v1393, %v1293
    %v1410 = vld [vmem:[#allocation2 + $0x90] sm:$0xff]
    %v1411 = vld [vmem:[#allocation2 + $0x98] sm:$0xff]
    %v1412 = vpack.c.bf16 %v1393, %v1392
    %1414 = vrot.lane.b32.xlu0 %v1412, 32
    %v1415 = vpop.permute.xlu0 %1414
    %v1417 = vsel %vm356, %v1415, 0
    %1419 = vmatprep.subr.bf16.mxu0 0
    %1420 = vmatpush1.bf16.msra.mxu0 0
    %1421 = vmatprep.subr.bf16.mxu0 0
    %1422 = vmatpush1.bf16.msra.mxu0 0
    %1423 = vmatprep.subr.bf16.mxu0 0
    %1424 = vmatpush1.bf16.msra.mxu0 0
    %1425 = vmatprep.subr.bf16.mxu0 0
    %1426 = vmatpush1.bf16.msra.mxu0 0
    %1427 = vmatprep.subr.bf16.mxu0 0
    %1428 = vmatpush1.bf16.msra.mxu0 0
    %1429 = vmatprep.subr.bf16.mxu0 0
    %1430 = vmatpush1.bf16.msra.mxu0 0
    %1431 = vmatprep.subr.bf16.mxu0 0
    %1432 = vmatpush1.bf16.msra.mxu0 %v353
    %1433 = vmatprep.subr.bf16.mxu0 0
    %1434 = vmatpush1.bf16.msra.mxu0 %v352
    %1435 = vmatprep.subr.bf16.mxu0 0
    %1436 = vmatpush2.bf16.msra.mxu0 0
    %1437 = vmatprep.subr.bf16.mxu0 0
    %1438 = vmatpush2.bf16.msra.mxu0 0
    %1439 = vmatprep.subr.bf16.mxu0 0
    %1440 = vmatpush2.bf16.msra.mxu0 0
    %1441 = vmatprep.subr.bf16.mxu0 0
    %1442 = vmatpush2.bf16.msra.mxu0 0
    %1443 = vmatprep.subr.bf16.mxu0 0
    %1444 = vmatpush2.bf16.msra.mxu0 0
    %1445 = vmatprep.subr.bf16.mxu0 0
    %1446 = vmatpush2.bf16.msra.mxu0 0
    %1447 = vmatprep.subr.bf16.mxu0 0
    %1448 = vmatpush2.bf16.msra.mxu0 0
    %1449 = vmatprep.subr.bf16.mxu0 0
    %1450 = vmatpush2.bf16.msra.mxu0 0
    %1451 = vmatprep.mubr.bf16.mxu0 0
    %1452 = vmatmul.mubr.bf16.gmra.mxu0 %v1417
    %v1453 = vpop.f32.mrf.mxu0
    %v1454 = vadd.f32 0.0, %v1453
    %v1455 = vpop.f32.mrf.mxu0
    %v1456 = vpop.f32.mrf.mxu0
    %v1457 = vadd.f32 0.0, %v1456
    %v1458 = vpop.f32.mrf.mxu0
    %1459 = vdwg.mxu0
    %v1460 = vadd.f32 %v1410, %v1454
    %v1461 = vadd.f32 %v1411, %v1457
    %v1462 = vxor.u32 %v1460, 2147483648
    %v1463 = vxor.u32 %v1461, 2147483648
    %v1464 = vmul.f32 %v1462, 1.442695
    %v1465 = vpow.pop %v1464
    %v1466 = vmul.f32 %v1463, 1.442695
    %v1467 = vpow.pop %v1466
    %v1468 = vadd.f32 %v1465, 1.0
    %v1469 = vadd.f32 %v1467, 1.0
    %v1470 = vrcp.pop %v1468
    %v1471 = vmul.f32 1.0, %v1470
    %v1472 = vrcp.pop %v1469
    %v1473 = vmul.f32 1.0, %v1472
    %v1474 = vtanh.pop %v1460
    %v1475 = vtanh.pop %v1461
    %v1476 = vmul.f32 %v1471, %v1380
    %v1477 = vmul.f32 %v1473, %v1381
    %1480 = vrot.lane.b32.xlu0 %v1474, 64
    %v1481 = vpop.permute.xlu0 %1480
    %1482 = vrot.lane.b32.xlu0 %v1475, 64
    %v1483 = vpop.permute.xlu0 %1482
    %v1486 = vmul.f32 %v1471, %v1481
    %v1487 = vmul.f32 %v1473, %v1483
    %1490 = vrot.lane.b32.xlu0 %v1486, 32
    %v1491 = vpop.permute.xlu0 %1490
    %1492 = vrot.lane.b32.xlu0 %v1487, 32
    %v1493 = vpop.permute.xlu0 %1492
    %v1496 = vadd.f32 %v1476, %v1491
    %v1497 = vadd.f32 %v1477, %v1493
    %v1498 = vtanh.pop %v1496
    %v1499 = vtanh.pop %v1497
    %1502 = vrot.lane.b32.xlu0 %v1498, 64
    %v1503 = vpop.permute.xlu0 %1502
    %1504 = vrot.lane.b32.xlu0 %v1499, 64
    %v1505 = vpop.permute.xlu0 %1504
    %v1508 = vmul.f32 %v1471, %v1503
    %v1509 = vmul.f32 %v1473, %v1505
    %s1510 = sadd.s32 %s334, 9
    %v1511 = vstv %s1510
    %vm1512 = vcmp.eq.s32.totalorder %v328, %v1511
    %vm1513 = vcmp.eq.s32.totalorder %v329, %v1511
    %v1514 = vsel %vm1512, 1, 0
    %v1515 = vsel %vm1513, 1, 0
    %1516 = vset.pattern.permute.xlu0 0
    %1517 = vperm.xlu0 %1516, %v1514
    %v1518 = vpop.permute.xlu0 %1517
    %1519 = vset.pattern.permute.xlu0 0
    %1520 = vperm.xlu0 %1519, %v1515
    %v1521 = vpop.permute.xlu0 %1520
    %vm1522 = vcmp.eq.s32.totalorder %v1518, 1
    %vm1523 = vcmp.eq.s32.totalorder %v1521, 1
    %v1524 = vsel %vm1522, %v1508, %v1408
    %v1525 = vsel %vm1523, %v1509, %v1409
    %v1526 = vld [vmem:[#allocation2 + $0xa0] sm:$0xff]
    %v1527 = vld [vmem:[#allocation2 + $0xa8] sm:$0xff]
    %v1528 = vpack.c.bf16 %v1509, %v1508
    %1530 = vrot.lane.b32.xlu0 %v1528, 32
    %v1531 = vpop.permute.xlu0 %1530
    %v1533 = vsel %vm356, %v1531, 0
    %1535 = vmatprep.subr.bf16.mxu0 0
    %1536 = vmatpush1.bf16.msra.mxu0 0
    %1537 = vmatprep.subr.bf16.mxu0 0
    %1538 = vmatpush1.bf16.msra.mxu0 0
    %1539 = vmatprep.subr.bf16.mxu0 0
    %1540 = vmatpush1.bf16.msra.mxu0 0
    %1541 = vmatprep.subr.bf16.mxu0 0
    %1542 = vmatpush1.bf16.msra.mxu0 0
    %1543 = vmatprep.subr.bf16.mxu0 0
    %1544 = vmatpush1.bf16.msra.mxu0 0
    %1545 = vmatprep.subr.bf16.mxu0 0
    %1546 = vmatpush1.bf16.msra.mxu0 0
    %1547 = vmatprep.subr.bf16.mxu0 0
    %1548 = vmatpush1.bf16.msra.mxu0 %v353
    %1549 = vmatprep.subr.bf16.mxu0 0
    %1550 = vmatpush1.bf16.msra.mxu0 %v352
    %1551 = vmatprep.subr.bf16.mxu0 0
    %1552 = vmatpush2.bf16.msra.mxu0 0
    %1553 = vmatprep.subr.bf16.mxu0 0
    %1554 = vmatpush2.bf16.msra.mxu0 0
    %1555 = vmatprep.subr.bf16.mxu0 0
    %1556 = vmatpush2.bf16.msra.mxu0 0
    %1557 = vmatprep.subr.bf16.mxu0 0
    %1558 = vmatpush2.bf16.msra.mxu0 0
    %1559 = vmatprep.subr.bf16.mxu0 0
    %1560 = vmatpush2.bf16.msra.mxu0 0
    %1561 = vmatprep.subr.bf16.mxu0 0
    %1562 = vmatpush2.bf16.msra.mxu0 0
    %1563 = vmatprep.subr.bf16.mxu0 0
    %1564 = vmatpush2.bf16.msra.mxu0 0
    %1565 = vmatprep.subr.bf16.mxu0 0
    %1566 = vmatpush2.bf16.msra.mxu0 0
    %1567 = vmatprep.mubr.bf16.mxu0 0
    %1568 = vmatmul.mubr.bf16.gmra.mxu0 %v1533
    %v1569 = vpop.f32.mrf.mxu0
    %v1570 = vadd.f32 0.0, %v1569
    %v1571 = vpop.f32.mrf.mxu0
    %v1572 = vpop.f32.mrf.mxu0
    %v1573 = vadd.f32 0.0, %v1572
    %v1574 = vpop.f32.mrf.mxu0
    %1575 = vdwg.mxu0
    %v1576 = vadd.f32 %v1526, %v1570
    %v1577 = vadd.f32 %v1527, %v1573
    %v1578 = vxor.u32 %v1576, 2147483648
    %v1579 = vxor.u32 %v1577, 2147483648
    %v1580 = vmul.f32 %v1578, 1.442695
    %v1581 = vpow.pop %v1580
    %v1582 = vmul.f32 %v1579, 1.442695
    %v1583 = vpow.pop %v1582
    %v1584 = vadd.f32 %v1581, 1.0
    %v1585 = vadd.f32 %v1583, 1.0
    %v1586 = vrcp.pop %v1584
    %v1587 = vmul.f32 1.0, %v1586
    %v1588 = vrcp.pop %v1585
    %v1589 = vmul.f32 1.0, %v1588
    %v1590 = vtanh.pop %v1576
    %v1591 = vtanh.pop %v1577
    %v1592 = vmul.f32 %v1587, %v1496
    %v1593 = vmul.f32 %v1589, %v1497
    %1596 = vrot.lane.b32.xlu0 %v1590, 64
    %v1597 = vpop.permute.xlu0 %1596
    %1598 = vrot.lane.b32.xlu0 %v1591, 64
    %v1599 = vpop.permute.xlu0 %1598
    %v1602 = vmul.f32 %v1587, %v1597
    %v1603 = vmul.f32 %v1589, %v1599
    %1606 = vrot.lane.b32.xlu0 %v1602, 32
    %v1607 = vpop.permute.xlu0 %1606
    %1608 = vrot.lane.b32.xlu0 %v1603, 32
    %v1609 = vpop.permute.xlu0 %1608
    %v1612 = vadd.f32 %v1592, %v1607
    %v1613 = vadd.f32 %v1593, %v1609
    %v1614 = vtanh.pop %v1612
    %v1615 = vtanh.pop %v1613
    %1618 = vrot.lane.b32.xlu0 %v1614, 64
    %v1619 = vpop.permute.xlu0 %1618
    %1620 = vrot.lane.b32.xlu0 %v1615, 64
    %v1621 = vpop.permute.xlu0 %1620
    %v1624 = vmul.f32 %v1587, %v1619
    %v1625 = vmul.f32 %v1589, %v1621
    %s1626 = sadd.s32 %s334, 10
    %v1627 = vstv %s1626
    %vm1628 = vcmp.eq.s32.totalorder %v328, %v1627
    %vm1629 = vcmp.eq.s32.totalorder %v329, %v1627
    %v1630 = vsel %vm1628, 1, 0
    %v1631 = vsel %vm1629, 1, 0
    %1632 = vset.pattern.permute.xlu0 0
    %1633 = vperm.xlu0 %1632, %v1630
    %v1634 = vpop.permute.xlu0 %1633
    %1635 = vset.pattern.permute.xlu0 0
    %1636 = vperm.xlu0 %1635, %v1631
    %v1637 = vpop.permute.xlu0 %1636
    %vm1638 = vcmp.eq.s32.totalorder %v1634, 1
    %vm1639 = vcmp.eq.s32.totalorder %v1637, 1
    %v1640 = vsel %vm1638, %v1624, %v1524
    %v1641 = vsel %vm1639, %v1625, %v1525
    %v1642 = vld [vmem:[#allocation2 + $0xb0] sm:$0xff]
    %v1643 = vld [vmem:[#allocation2 + $0xb8] sm:$0xff]
    %v1644 = vpack.c.bf16 %v1625, %v1624
    %1646 = vrot.lane.b32.xlu0 %v1644, 32
    %v1647 = vpop.permute.xlu0 %1646
    %v1649 = vsel %vm356, %v1647, 0
    %1651 = vmatprep.subr.bf16.mxu0 0
    %1652 = vmatpush1.bf16.msra.mxu0 0
    %1653 = vmatprep.subr.bf16.mxu0 0
    %1654 = vmatpush1.bf16.msra.mxu0 0
    %1655 = vmatprep.subr.bf16.mxu0 0
    %1656 = vmatpush1.bf16.msra.mxu0 0
    %1657 = vmatprep.subr.bf16.mxu0 0
    %1658 = vmatpush1.bf16.msra.mxu0 0
    %1659 = vmatprep.subr.bf16.mxu0 0
    %1660 = vmatpush1.bf16.msra.mxu0 0
    %1661 = vmatprep.subr.bf16.mxu0 0
    %1662 = vmatpush1.bf16.msra.mxu0 0
    %1663 = vmatprep.subr.bf16.mxu0 0
    %1664 = vmatpush1.bf16.msra.mxu0 %v353
    %1665 = vmatprep.subr.bf16.mxu0 0
    %1666 = vmatpush1.bf16.msra.mxu0 %v352
    %1667 = vmatprep.subr.bf16.mxu0 0
    %1668 = vmatpush2.bf16.msra.mxu0 0
    %1669 = vmatprep.subr.bf16.mxu0 0
    %1670 = vmatpush2.bf16.msra.mxu0 0
    %1671 = vmatprep.subr.bf16.mxu0 0
    %1672 = vmatpush2.bf16.msra.mxu0 0
    %1673 = vmatprep.subr.bf16.mxu0 0
    %1674 = vmatpush2.bf16.msra.mxu0 0
    %1675 = vmatprep.subr.bf16.mxu0 0
    %1676 = vmatpush2.bf16.msra.mxu0 0
    %1677 = vmatprep.subr.bf16.mxu0 0
    %1678 = vmatpush2.bf16.msra.mxu0 0
    %1679 = vmatprep.subr.bf16.mxu0 0
    %1680 = vmatpush2.bf16.msra.mxu0 0
    %1681 = vmatprep.subr.bf16.mxu0 0
    %1682 = vmatpush2.bf16.msra.mxu0 0
    %1683 = vmatprep.mubr.bf16.mxu0 0
    %1684 = vmatmul.mubr.bf16.gmra.mxu0 %v1649
    %v1685 = vpop.f32.mrf.mxu0
    %v1686 = vadd.f32 0.0, %v1685
    %v1687 = vpop.f32.mrf.mxu0
    %v1688 = vpop.f32.mrf.mxu0
    %v1689 = vadd.f32 0.0, %v1688
    %v1690 = vpop.f32.mrf.mxu0
    %1691 = vdwg.mxu0
    %v1692 = vadd.f32 %v1642, %v1686
    %v1693 = vadd.f32 %v1643, %v1689
    %v1694 = vxor.u32 %v1692, 2147483648
    %v1695 = vxor.u32 %v1693, 2147483648
    %v1696 = vmul.f32 %v1694, 1.442695
    %v1697 = vpow.pop %v1696
    %v1698 = vmul.f32 %v1695, 1.442695
    %v1699 = vpow.pop %v1698
    %v1700 = vadd.f32 %v1697, 1.0
    %v1701 = vadd.f32 %v1699, 1.0
    %v1702 = vrcp.pop %v1700
    %v1703 = vmul.f32 1.0, %v1702
    %v1704 = vrcp.pop %v1701
    %v1705 = vmul.f32 1.0, %v1704
    %v1706 = vtanh.pop %v1692
    %v1707 = vtanh.pop %v1693
    %v1708 = vmul.f32 %v1703, %v1612
    %v1709 = vmul.f32 %v1705, %v1613
    %1712 = vrot.lane.b32.xlu0 %v1706, 64
    %v1713 = vpop.permute.xlu0 %1712
    %1714 = vrot.lane.b32.xlu0 %v1707, 64
    %v1715 = vpop.permute.xlu0 %1714
    %v1718 = vmul.f32 %v1703, %v1713
    %v1719 = vmul.f32 %v1705, %v1715
    %1722 = vrot.lane.b32.xlu0 %v1718, 32
    %v1723 = vpop.permute.xlu0 %1722
    %1724 = vrot.lane.b32.xlu0 %v1719, 32
    %v1725 = vpop.permute.xlu0 %1724
    %v1728 = vadd.f32 %v1708, %v1723
    %v1729 = vadd.f32 %v1709, %v1725
    %v1730 = vtanh.pop %v1728
    %v1731 = vtanh.pop %v1729
    %1734 = vrot.lane.b32.xlu0 %v1730, 64
    %v1735 = vpop.permute.xlu0 %1734
    %1736 = vrot.lane.b32.xlu0 %v1731, 64
    %v1737 = vpop.permute.xlu0 %1736
    %v1740 = vmul.f32 %v1703, %v1735
    %v1741 = vmul.f32 %v1705, %v1737
    %s1742 = sadd.s32 %s334, 11
    %v1743 = vstv %s1742
    %vm1744 = vcmp.eq.s32.totalorder %v328, %v1743
    %vm1745 = vcmp.eq.s32.totalorder %v329, %v1743
    %v1746 = vsel %vm1744, 1, 0
    %v1747 = vsel %vm1745, 1, 0
    %1748 = vset.pattern.permute.xlu0 0
    %1749 = vperm.xlu0 %1748, %v1746
    %v1750 = vpop.permute.xlu0 %1749
    %1751 = vset.pattern.permute.xlu0 0
    %1752 = vperm.xlu0 %1751, %v1747
    %v1753 = vpop.permute.xlu0 %1752
    %vm1754 = vcmp.eq.s32.totalorder %v1750, 1
    %vm1755 = vcmp.eq.s32.totalorder %v1753, 1
    %v1756 = vsel %vm1754, %v1740, %v1640
    %v1757 = vsel %vm1755, %v1741, %v1641
    %1760 = vrot.lane.b32.xlu0 %v1740, 32
    %v1761 = vpop.permute.xlu0 %1760
    %1762 = vrot.lane.b32.xlu0 %v1741, 32
    %v1763 = vpop.permute.xlu0 %1762
    %1766 = vst.msk [vmem:[#allocation3] sm:$0xff] %vm356, %v1761
    %1767 = vst.msk [vmem:[#allocation3 + $0x8] sm:$0xff] %vm356, %v1763
    %1770 = vrot.lane.b32.xlu0 %v1728, 96
    %v1771 = vpop.permute.xlu0 %1770
    %1772 = vrot.lane.b32.xlu0 %v1729, 96
    %v1773 = vpop.permute.xlu0 %1772
    %1776 = vst.msk [vmem:[#allocation4] sm:$0xff] %vm356, %v1771
    %1777 = vst.msk [vmem:[#allocation4 + $0x8] sm:$0xff] %vm356, %v1773
    %1780 = vrot.lane.b32.xlu0 %v1756, 32
    %v1781 = vpop.permute.xlu0 %1780
    %1782 = vrot.lane.b32.xlu0 %v1757, 32
    %v1783 = vpop.permute.xlu0 %1782
    %1786 = vst.msk [vmem:[#allocation5] sm:$0xff] %vm356, %v1781
    %1787 = vst.msk [vmem:[#allocation5 + $0x8] sm:$0xff] %vm356, %v1783
    // Predicated region
    $region34: #{tpu_custom_call.1} parent=1 // pred_check
      %p1788 = pneg %p28
    $region35: #{tpu_custom_call.1} parent=1 // pred_check_branch
      %1790 = sbr.rel (%p1788) target = $region37
    $region36: #{tpu_custom_call.1} parent=1 // pred_region
      %v1791 = vpack.c.bf16 %v1757, %v1756
      %v1792 = vld [vmem:[%s5] sm:$0xf]
      %v1793 = vld [vmem:[%s5 + $0x4] sm:$0xf]
      %v1794 = vld [vmem:[%s5 + $0x8] sm:$0xf]
      %v1795 = vld [vmem:[%s5 + $0xc] sm:$0xf]
      %v1796 = vld [vmem:[%s6] sm:$0x1]
      %v1798 = vlaneseq
      %v1799 = vshrl.u32 %v1798, 7
      %v1800 = vsub.s32 0, %v1799
      %v1801 = vrot.slane %v1796, %v1800
      %1804 = vrot.lane.b32.xlu0 %v1791, 32
      %v1805 = vpop.permute.xlu0 %1804
      %v1810 = vunpack.c.l.b16 %v1792
      %v1811 = vunpack.c.l.b16 %v1793
      %v1812 = vunpack.c.l.b16 %v1794
      %v1813 = vunpack.c.l.b16 %v1795
      %v1814 = vpack.c.b16 %v1811, %v1810
      %v1815 = vpack.c.b16 %v1813, %v1812
      %v1819 = vsel %vm356, %v1805, 0
      %1821 = vmatprep.subr.bf16.mxu0 0
      %1822 = vmatpush1.bf16.msra.mxu0 0
      %1823 = vmatprep.subr.bf16.mxu0 0
      %1824 = vmatpush1.bf16.msra.mxu0 0
      %1825 = vmatprep.subr.bf16.mxu0 0
      %1826 = vmatpush1.bf16.msra.mxu0 0
      %1827 = vmatprep.subr.bf16.mxu0 0
      %1828 = vmatpush1.bf16.msra.mxu0 0
      %1829 = vmatprep.subr.bf16.mxu0 0
      %1830 = vmatpush1.bf16.msra.mxu0 0
      %1831 = vmatprep.subr.bf16.mxu0 0
      %1832 = vmatpush1.bf16.msra.mxu0 0
      %1833 = vmatprep.subr.bf16.mxu0 0
      %1834 = vmatpush1.bf16.msra.mxu0 %v1815
      %1835 = vmatprep.subr.bf16.mxu0 0
      %1836 = vmatpush1.bf16.msra.mxu0 %v1814
      %1837 = vmatprep.subr.bf16.mxu0 0
      %1838 = vmatpush2.bf16.msra.mxu0 0
      %1839 = vmatprep.subr.bf16.mxu0 0
      %1840 = vmatpush2.bf16.msra.mxu0 0
      %1841 = vmatprep.subr.bf16.mxu0 0
      %1842 = vmatpush2.bf16.msra.mxu0 0
      %1843 = vmatprep.subr.bf16.mxu0 0
      %1844 = vmatpush2.bf16.msra.mxu0 0
      %1845 = vmatprep.subr.bf16.mxu0 0
      %1846 = vmatpush2.bf16.msra.mxu0 0
      %1847 = vmatprep.subr.bf16.mxu0 0
      %1848 = vmatpush2.bf16.msra.mxu0 0
      %1849 = vmatprep.subr.bf16.mxu0 0
      %1850 = vmatpush2.bf16.msra.mxu0 0
      %1851 = vmatprep.subr.bf16.mxu0 0
      %1852 = vmatpush2.bf16.msra.mxu0 0
      %1853 = vmatprep.mubr.bf16.mxu0 0
      %1854 = vmatmul.mubr.bf16.gmra.mxu0 %v1819
      %v1855 = vpop.f32.mrf.mxu0
      %v1856 = vadd.f32 %v1801, %v1855
      %v1857 = vpop.f32.mrf.mxu0
      %v1858 = vpop.f32.mrf.mxu0
      %v1859 = vadd.f32 %v1801, %v1858
      %v1860 = vpop.f32.mrf.mxu0
      %1861 = vdwg.mxu0
      %1862 = vst [vmem:[#allocation6] sm:$0xff] %v1856
      %1863 = vst [vmem:[#allocation6 + $0x8] sm:$0xff] %v1859
    $region37: #{tpu_custom_call.1} parent=1 // pred_fallthru
      _
    // Predicated region
    $region38: #{tpu_custom_call.1} parent=1 // pred_check
      _
    $region39: #{tpu_custom_call.1} parent=1 // pred_check_branch
      %1865 = sbr.rel (0) target = $region41
    $region40: #{tpu_custom_call.1} parent=1 // pred_region
      %s1867 = ssub.s32 256, 256
      %1868 = vsyncadd [#allocation7], %s1867
      %s1869 = sshll.u32 [#allocation6], 4
      %s1870 = int_to_ptr.vmem [resolvable:$true] %s1869
      %1875 = dma.vmem_to_hbm [thread:$0]  %s1870, 256, %s7, [#allocation7], 128, 128, 8
    $region41: #{tpu_custom_call.1} parent=1 // pred_fallthru
      _
    // Predicated region
    $region42: #{tpu_custom_call.1} parent=1 // pred_check
      _
    $region43: #{tpu_custom_call.1} parent=1 // pred_check_branch
      %1877 = sbr.rel (0) target = $region45
    $region44: #{tpu_custom_call.1} parent=1 // pred_region
      %1878 = dma.done [#allocation7], 256
    $region45: #{tpu_custom_call.1} parent=1 // pred_fallthru
      _
    %1879 = vsyncpa [#allocation7], 1

</llo_original>
